<compile_context>
chip_gen: v6e
topology: v6e:2x2x1
jax: 0.10.0
libtpu: 0.0.40
codegen_flags: <defaults>
</compile_context>

<pallas_src>
import jax
import jax.numpy as jnp
from jax.experimental import pallas as pl
from jax.experimental.pallas import tpu as pltpu


# ------------------------------------------------------------------
# Fused basic-block kernel (factory closes over static config)
# ------------------------------------------------------------------
def _make_block_kernel(has_ds, eps, mxu_dtype):
    def kernel(*refs):
        a1 = refs[0]                          # (M, 3*Cin) f32, im2col'd conv1 input
        w1, g1, b1, w2, g2, b2 = refs[1:7]    # weights pre-cast to mxu_dtype, BN params f32 (1,P)
        idx = 7
        if has_ds:
            wds, gds, bds = refs[7:10]
            idx = 10
        o_ref = refs[idx]                     # (M, P) f32
        h1p = refs[idx + 1]                   # (N, Lout+2, P) f32 scratch with zero halos

        N, Lp, P = h1p.shape
        Lout = Lp - 2
        M = N * Lout
        Cin = a1.shape[1] // 3
        inv_cnt = 1.0 / float(M)

        def bn(z, g_ref, b_ref):
            # one-pass training-mode BatchNorm1d (biased variance) over all N*Lout rows, f32
            s = jnp.sum(z, axis=0, keepdims=True)
            s2 = jnp.sum(z * z, axis=0, keepdims=True)
            mean = s * inv_cnt
            var = s2 * inv_cnt - mean * mean
            return (z - mean) * (jax.lax.rsqrt(var + eps) * g_ref[...]) + b_ref[...]

        # ---- conv1: ONE batch-folded MXU matmul, K = 3*Cin (taps concatenated) ----
        z1 = jnp.dot(a1[...].astype(mxu_dtype), w1[...],
                     preferred_element_type=jnp.float32)                 # (M, P) f32

        # ---- bn1 + relu; halo-only zeroing, single interior write of the padded scratch ----
        h1p[:, 0:1, :] = jnp.zeros((N, 1, P), jnp.float32)
        h1p[:, Lout + 1:Lout + 2, :] = jnp.zeros((N, 1, P), jnp.float32)
        h1p[:, 1:Lout + 1, :] = jnp.maximum(bn(z1, g1, b1), 0.0).reshape(N, Lout, P)

        # ---- conv2: K-concat im2col along lanes -> ONE MXU matmul, K = 3*P ----
        a2 = jnp.concatenate(
            [h1p[:, 0:Lout, :], h1p[:, 1:Lout + 1, :], h1p[:, 2:Lout + 2, :]], axis=-1)
        z2 = jnp.dot(a2.reshape(M, 3 * P).astype(mxu_dtype), w2[...],
                     preferred_element_type=jnp.float32)                 # (M, P) f32
        y2 = bn(z2, g2, b2)

        # ---- identity / downsample (tap-1 columns of a1 are exactly x[:, ::stride, :]) ----
        xi = a1[:, Cin:2 * Cin]
        if has_ds:
            zd = jnp.dot(xi.astype(mxu_dtype), wds[...],
                         preferred_element_type=jnp.float32)
            ident = bn(zd, gds, bds)
        else:
            ident = xi                        # stride == 1 and Cin == P in this case (f32)

        # ---- residual add + relu, single lane-dense store ----
        o_ref[...] = jnp.maximum(y2 + ident, 0.0).astype(o_ref.dtype)

    return kernel


# ------------------------------------------------------------------
# Wrappers: one fused pallas_call per basic block
# ------------------------------------------------------------------
def basic_block_enc_forward_nlc(x_nlc, p, mxu_dtype=jnp.bfloat16, eps=1e-5):
    """x_nlc: (N, L, Cin) lane-dense layout. Returns (N, Lout, planes) f32 in NLC."""
    N, L, Cin = x_nlc.shape
    stride = p['stride']
    planes = p['w1'].shape[2]
    has_ds = 'ds_w' in p
    if (stride != 1 or Cin != planes) and not has_ds:
        raise ValueError("downsample params required when stride != 1 or inplanes != planes")
    Lout = (L - 1) // stride + 1              # kernel=3, padding=1
    M = N * Lout

    xf = x_nlc.astype(jnp.float32)
    xp = jnp.pad(xf, ((0, 0), (1, 1), (0, 0)))                      # (N, L+2, Cin)
    # im2col: concat the 3 conv taps along the contraction dim, fold batch+length into M rows
    taps = [xp[:, k::stride, :][:, :Lout, :] for k in range(3)]     # each (N, Lout, Cin)
    a1 = jnp.concatenate(taps, axis=-1).reshape(M, 3 * Cin)         # (M, 3*Cin) f32

    wd = mxu_dtype
    params = [p['w1'].reshape(3 * Cin, planes).astype(wd),
              p['bn1_g'].reshape(1, planes), p['bn1_b'].reshape(1, planes),
              p['w2'].reshape(3 * planes, planes).astype(wd),
              p['bn2_g'].reshape(1, planes), p['bn2_b'].reshape(1, planes)]
    if has_ds:
        params += [p['ds_w'].astype(wd),
                   p['ds_g'].reshape(1, planes), p['ds_b'].reshape(1, planes)]
    inputs = [a1] + params

    # Generous VMEM bound: inputs + scratch + output + temporaries (grid-less -> no double-buffer)
    est = 4 * (a1.size + N * (Lout + 2) * planes + M * planes) \
        + sum(int(w.size) * 4 for w in params)
    vmem_limit = int(min(max(4 * est + (8 << 20), 16 << 20), 48 << 20))

    vmem = pltpu.MemorySpace.VMEM
    out = pl.pallas_call(
        _make_block_kernel(has_ds, eps, mxu_dtype),
        out_shape=jax.ShapeDtypeStruct((M, planes), jnp.float32),
        in_specs=[pl.BlockSpec(memory_space=vmem) for _ in inputs],
        out_specs=pl.BlockSpec(memory_space=vmem),
        scratch_shapes=[pltpu.VMEM((N, Lout + 2, planes), jnp.float32)],
        compiler_params=pltpu.CompilerParams(vmem_limit_bytes=vmem_limit),
    )(*inputs)
    return out.reshape(N, Lout, planes)


def basic_block_enc_forward(x, p, mxu_dtype=jnp.bfloat16, eps=1e-5):
    """x: (N, Cin, L) PyTorch NCL layout. Returns (N, planes, Lout) in NCL."""
    y = basic_block_enc_forward_nlc(jnp.transpose(x, (0, 2, 1)), p, mxu_dtype, eps)
    return jnp.transpose(y, (0, 2, 1))


# ------------------------------------------------------------------
# Parameter construction (mirrors nn.Conv1d / nn.BatchNorm1d defaults;
# conv weights stored per-tap (K, Cin, Cout); K-concat reshape + bf16 cast is done in the wrapper)
# ------------------------------------------------------------------
def _init_conv_taps(key, cout, cin, ksz):
    bound = 1.0 / float((cin * ksz) ** 0.5)
    w = jax.random.uniform(key, (cout, cin, ksz), jnp.float32, -bound, bound)
    return jnp.transpose(w, (2, 1, 0))        # (K, Cin, Cout)


def init_basic_block_params(key, inplanes, planes, stride=1):
    k1, k2, k3 = jax.random.split(key, 3)
    p = {
        'stride': stride,
        'w1': _init_conv_taps(k1, planes, inplanes, 3),
        'bn1_g': jnp.ones((planes,), jnp.float32),
        'bn1_b': jnp.zeros((planes,), jnp.float32),
        'w2': _init_conv_taps(k2, planes, planes, 3),
        'bn2_g': jnp.ones((planes,), jnp.float32),
        'bn2_b': jnp.zeros((planes,), jnp.float32),
    }
    if stride != 1 or inplanes != planes:
        p['ds_w'] = _init_conv_taps(k3, planes, inplanes, 1)[0]   # (Cin, Cout)
        p['ds_g'] = jnp.ones((planes,), jnp.float32)
        p['ds_b'] = jnp.zeros((planes,), jnp.float32)
    return p


# ------------------------------------------------------------------
# Pure-JAX (XLA) reference for correctness checking.
# `mxu_dtype` emulates the kernel's matmul-operand rounding (accumulation stays f32).
# ------------------------------------------------------------------
def _ref_conv3(x_nlc, w_taps, stride, mxu_dtype):
    N, L, Cin = x_nlc.shape
    Lout = (L - 1) // stride + 1
    xp = jnp.pad(x_nlc, ((0, 0), (1, 1), (0, 0)))
    out = jnp.zeros((N, Lout, w_taps.shape[2]), jnp.float32)
    for k in range(3):
        sl = xp[:, k::stride, :][:, :Lout, :]
        out = out + jnp.einsum(
            'nlc,cd->nld',
            sl.astype(mxu_dtype).astype(jnp.float32),
            w_taps[k].astype(mxu_dtype).astype(jnp.float32),
            precision=jax.lax.Precision.HIGHEST)
    return out


def _ref_bn(v, g, b, eps=1e-5):
    mean = jnp.mean(v, axis=(0, 1), keepdims=True)
    var = jnp.mean((v - mean) ** 2, axis=(0, 1), keepdims=True)
    return (v - mean) * jax.lax.rsqrt(var + eps) * g.reshape(1, 1, -1) + b.reshape(1, 1, -1)


def basic_block_enc_ref_nlc(x_nlc, p, mxu_dtype=jnp.float32, eps=1e-5):
    xf = x_nlc.astype(jnp.float32)
    stride = p['stride']
    h = _ref_conv3(xf, p['w1'], stride, mxu_dtype)
    h = jnp.maximum(_ref_bn(h, p['bn1_g'], p['bn1_b'], eps), 0.0)
    h = _ref_conv3(h, p['w2'], 1, mxu_dtype)
    h = _ref_bn(h, p['bn2_g'], p['bn2_b'], eps)
    if 'ds_w' in p:
        Lout = h.shape[1]
        xi = xf[:, ::stride, :][:, :Lout, :]
        idv = jnp.einsum('nlc,cd->nld',
                         xi.astype(mxu_dtype).astype(jnp.float32),
                         p['ds_w'].astype(mxu_dtype).astype(jnp.float32),
                         precision=jax.lax.Precision.HIGHEST)
        idv = _ref_bn(idv, p['ds_g'], p['ds_b'], eps)
    else:
        idv = xf
    return jnp.maximum(h + idv, 0.0)


# ------------------------------------------------------------------
if __name__ == "__main__":
    key = jax.random.PRNGKey(0)
    kp1, kp2, kx = jax.random.split(key, 3)

    # Block A: identity residual (64 -> 64, stride 1).
    # Block B: strided block with 1x1-conv + BN downsample (64 -> 128, stride 2).
    pA = init_basic_block_params(kp1, inplanes=64, planes=64, stride=1)
    pB = init_basic_block_params(kp2, inplanes=64, planes=128, stride=2)

    x = jax.random.normal(kx, (2, 64, 16), jnp.float32)      # (N, C, L) PyTorch layout

    # Stack two blocks keeping activations in lane-dense NLC between blocks
    # (one NCL<->NLC transpose at each end of the stack only).
    def stack(x_ncl, mxu_dtype):
        h = jnp.transpose(x_ncl, (0, 2, 1))
        h = basic_block_enc_forward_nlc(h, pA, mxu_dtype=mxu_dtype)
        h = basic_block_enc_forward_nlc(h, pB, mxu_dtype=mxu_dtype)
        return jnp.transpose(h, (0, 2, 1))

    y_bf16 = jax.jit(lambda v: stack(v, jnp.bfloat16))(x)    # perf default: bf16 MXU operands
    y_f32 = jax.jit(lambda v: stack(v, jnp.float32))(x)      # exact-semantics mode
    jax.block_until_ready((y_bf16, y_f32))

    assert y_bf16.shape == (2, 128, 8) and y_f32.shape == (2, 128, 8)
    assert y_bf16.dtype == jnp.float32 and y_f32.dtype == jnp.float32

    # correctness vs pure-JAX/XLA references of the PyTorch forward
    def ref_stack(x_ncl, mxu_dtype):
        h = jnp.transpose(x_ncl, (0, 2, 1))
        h = basic_block_enc_ref_nlc(h, pA, mxu_dtype=mxu_dtype)
        h = basic_block_enc_ref_nlc(h, pB, mxu_dtype=mxu_dtype)
        return jnp.transpose(h, (0, 2, 1))

    ref_f32 = ref_stack(x, jnp.float32)
    ref_bf16 = ref_stack(x, jnp.bfloat16)
    assert bool(jnp.allclose(y_f32, ref_f32, rtol=1e-3, atol=1e-3)), "f32-mode mismatch"
    assert bool(jnp.allclose(y_bf16, ref_bf16, rtol=1e-2, atol=1e-2)), "bf16-mode mismatch"

    # NCL single-block entry-point sanity check (block A, exact mode)
    yA = jax.jit(lambda v: basic_block_enc_forward(v, pA, mxu_dtype=jnp.float32))(x)
    jax.block_until_ready(yA)
    refA = jnp.transpose(
        basic_block_enc_ref_nlc(jnp.transpose(x, (0, 2, 1)), pA, mxu_dtype=jnp.float32),
        (0, 2, 1))
    assert yA.shape == (2, 64, 16)
    assert bool(jnp.allclose(yA, refA, rtol=1e-3, atol=1e-3)), "NCL entry mismatch"

    print("KERNEL_OK")
</pallas_src>

<mosaic_0001>
module attributes {stable_mosaic.version = 11 : i64} {
  func.func @kernel(%arg0: memref<32x192xf32, #tpu.memory_space<vmem>>, %arg1: memref<192x64xbf16, #tpu.memory_space<vmem>>, %arg2: memref<1x64xf32, #tpu.memory_space<vmem>>, %arg3: memref<1x64xf32, #tpu.memory_space<vmem>>, %arg4: memref<192x64xbf16, #tpu.memory_space<vmem>>, %arg5: memref<1x64xf32, #tpu.memory_space<vmem>>, %arg6: memref<1x64xf32, #tpu.memory_space<vmem>>, %arg7: memref<32x64xf32, #tpu.memory_space<vmem>>, %arg8: memref<2x18x64xf32, #tpu.memory_space<vmem>>) attributes {dimension_semantics = [], scalar_prefetch = 0 : i64, scratch_operands = 1 : i64, tpu.core_type = #tpu.core_type<tc>} {
    %c0 = arith.constant 0 : index
    %c0_0 = arith.constant 0 : index
    %0 = vector.load %arg0[%c0, %c0_0] : memref<32x192xf32, #tpu.memory_space<vmem>>, vector<32x192xf32>
    %1 = arith.truncf %0 : vector<32x192xf32> to vector<32x192xbf16>
    %c0_1 = arith.constant 0 : index
    %c0_2 = arith.constant 0 : index
    %2 = vector.load %arg1[%c0_1, %c0_2] : memref<192x64xbf16, #tpu.memory_space<vmem>>, vector<192x64xbf16>
    %cst = arith.constant dense<0.000000e+00> : vector<32x64xf32>
    %3 = tpu.matmul %1, %2, %cst {dimension_numbers = #tpu.dot_dimension_numbers<[1], [0], [0], [1], [0, 0, 1, 1], [], []>} : vector<32x192xbf16>, vector<192x64xbf16>, vector<32x64xf32> -> vector<32x64xf32>
    %cst_3 = arith.constant 0.000000e+00 : f32
    %4 = vector.broadcast %cst_3 : f32 to vector<2x1x64xf32>
    %c0_4 = arith.constant 0 : index
    %c0_5 = arith.constant 0 : index
    %c0_6 = arith.constant 0 : index
    %5 = vector.load %arg8[%c0_4, %c0_5, %c0_6] : memref<2x18x64xf32, #tpu.memory_space<vmem>>, vector<2x1x64xf32>
    tpu.vector_store %arg8[%c0_4, %c0_5, %c0_6], %4 {strides = array<i32>} : memref<2x18x64xf32, #tpu.memory_space<vmem>>, vector<2x1x64xf32>,
    %cst_7 = arith.constant 0.000000e+00 : f32
    %6 = vector.broadcast %cst_7 : f32 to vector<2x1x64xf32>
    %c0_8 = arith.constant 0 : index
    %c17 = arith.constant 17 : index
    %c0_9 = arith.constant 0 : index
    %7 = vector.load %arg8[%c0_8, %c17, %c0_9] : memref<2x18x64xf32, #tpu.memory_space<vmem>>, vector<2x1x64xf32>
    tpu.vector_store %arg8[%c0_8, %c17, %c0_9], %6 {strides = array<i32>} : memref<2x18x64xf32, #tpu.memory_space<vmem>>, vector<2x1x64xf32>,
    %cst_10 = arith.constant dense<0.000000e+00> : vector<64xf32>
    %8 = vector.multi_reduction <add>, %3, %cst_10 [0] : vector<32x64xf32> to vector<64xf32>
    %9 = vector.shape_cast %8 : vector<64xf32> to vector<1x64xf32>
    %10 = arith.mulf %3, %3 : vector<32x64xf32>
    %cst_11 = arith.constant dense<0.000000e+00> : vector<64xf32>
    %11 = vector.multi_reduction <add>, %10, %cst_11 [0] : vector<32x64xf32> to vector<64xf32>
    %12 = vector.shape_cast %11 : vector<64xf32> to vector<1x64xf32>
    %cst_12 = arith.constant 3.125000e-02 : f32
    %13 = vector.broadcast %cst_12 : f32 to vector<1x64xf32>
    %14 = arith.mulf %9, %13 : vector<1x64xf32>
    %cst_13 = arith.constant 3.125000e-02 : f32
    %15 = vector.broadcast %cst_13 : f32 to vector<1x64xf32>
    %16 = arith.mulf %12, %15 : vector<1x64xf32>
    %17 = arith.mulf %14, %14 : vector<1x64xf32>
    %18 = arith.subf %16, %17 : vector<1x64xf32>
    %19 = vector.broadcast %14 : vector<1x64xf32> to vector<32x64xf32>
    %20 = arith.subf %3, %19 : vector<32x64xf32>
    %cst_14 = arith.constant 9.99999974E-6 : f32
    %21 = vector.broadcast %cst_14 : f32 to vector<1x64xf32>
    %22 = arith.addf %18, %21 : vector<1x64xf32>
    %23 = math.rsqrt %22 : vector<1x64xf32>
    %c0_15 = arith.constant 0 : index
    %c0_16 = arith.constant 0 : index
    %24 = vector.load %arg2[%c0_15, %c0_16] : memref<1x64xf32, #tpu.memory_space<vmem>>, vector<1x64xf32>
    %25 = arith.mulf %23, %24 : vector<1x64xf32>
    %26 = vector.broadcast %25 : vector<1x64xf32> to vector<32x64xf32>
    %27 = arith.mulf %20, %26 : vector<32x64xf32>
    %c0_17 = arith.constant 0 : index
    %c0_18 = arith.constant 0 : index
    %28 = vector.load %arg3[%c0_17, %c0_18] : memref<1x64xf32, #tpu.memory_space<vmem>>, vector<1x64xf32>
    %29 = vector.broadcast %28 : vector<1x64xf32> to vector<32x64xf32>
    %30 = arith.addf %27, %29 : vector<32x64xf32>
    %cst_19 = arith.constant 0.000000e+00 : f32
    %31 = vector.broadcast %cst_19 : f32 to vector<32x64xf32>
    %32 = arith.maximumf %30, %31 : vector<32x64xf32>
    %33 = vector.shape_cast %32 : vector<32x64xf32> to vector<2x16x64xf32>
    %c0_20 = arith.constant 0 : index
    %c1 = arith.constant 1 : index
    %c0_21 = arith.constant 0 : index
    %34 = vector.load %arg8[%c0_20, %c1, %c0_21] : memref<2x18x64xf32, #tpu.memory_space<vmem>>, vector<2x16x64xf32>
    tpu.vector_store %arg8[%c0_20, %c1, %c0_21], %33 {strides = array<i32>} : memref<2x18x64xf32, #tpu.memory_space<vmem>>, vector<2x16x64xf32>,
    %c0_22 = arith.constant 0 : index
    %c0_23 = arith.constant 0 : index
    %c0_24 = arith.constant 0 : index
    %35 = vector.load %arg8[%c0_22, %c0_23, %c0_24] : memref<2x18x64xf32, #tpu.memory_space<vmem>>, vector<2x16x64xf32>
    %c0_25 = arith.constant 0 : index
    %c1_26 = arith.constant 1 : index
    %c0_27 = arith.constant 0 : index
    %36 = vector.load %arg8[%c0_25, %c1_26, %c0_27] : memref<2x18x64xf32, #tpu.memory_space<vmem>>, vector<2x16x64xf32>
    %c0_28 = arith.constant 0 : index
    %c2 = arith.constant 2 : index
    %c0_29 = arith.constant 0 : index
    %37 = vector.load %arg8[%c0_28, %c2, %c0_29] : memref<2x18x64xf32, #tpu.memory_space<vmem>>, vector<2x16x64xf32>
    %38 = tpu.concatenate %35, %36, %37 in 2 : vector<2x16x64xf32>, vector<2x16x64xf32>, vector<2x16x64xf32> -> vector<2x16x192xf32>
    %39 = vector.shape_cast %38 : vector<2x16x192xf32> to vector<32x192xf32>
    %40 = arith.truncf %39 : vector<32x192xf32> to vector<32x192xbf16>
    %c0_30 = arith.constant 0 : index
    %c0_31 = arith.constant 0 : index
    %41 = vector.load %arg4[%c0_30, %c0_31] : memref<192x64xbf16, #tpu.memory_space<vmem>>, vector<192x64xbf16>
    %cst_32 = arith.constant dense<0.000000e+00> : vector<32x64xf32>
    %42 = tpu.matmul %40, %41, %cst_32 {dimension_numbers = #tpu.dot_dimension_numbers<[1], [0], [0], [1], [0, 0, 1, 1], [], []>} : vector<32x192xbf16>, vector<192x64xbf16>, vector<32x64xf32> -> vector<32x64xf32>
    %cst_33 = arith.constant dense<0.000000e+00> : vector<64xf32>
    %43 = vector.multi_reduction <add>, %42, %cst_33 [0] : vector<32x64xf32> to vector<64xf32>
    %44 = vector.shape_cast %43 : vector<64xf32> to vector<1x64xf32>
    %45 = arith.mulf %42, %42 : vector<32x64xf32>
    %cst_34 = arith.constant dense<0.000000e+00> : vector<64xf32>
    %46 = vector.multi_reduction <add>, %45, %cst_34 [0] : vector<32x64xf32> to vector<64xf32>
    %47 = vector.shape_cast %46 : vector<64xf32> to vector<1x64xf32>
    %cst_35 = arith.constant 3.125000e-02 : f32
    %48 = vector.broadcast %cst_35 : f32 to vector<1x64xf32>
    %49 = arith.mulf %44, %48 : vector<1x64xf32>
    %cst_36 = arith.constant 3.125000e-02 : f32
    %50 = vector.broadcast %cst_36 : f32 to vector<1x64xf32>
    %51 = arith.mulf %47, %50 : vector<1x64xf32>
    %52 = arith.mulf %49, %49 : vector<1x64xf32>
    %53 = arith.subf %51, %52 : vector<1x64xf32>
    %54 = vector.broadcast %49 : vector<1x64xf32> to vector<32x64xf32>
    %55 = arith.subf %42, %54 : vector<32x64xf32>
    %cst_37 = arith.constant 9.99999974E-6 : f32
    %56 = vector.broadcast %cst_37 : f32 to vector<1x64xf32>
    %57 = arith.addf %53, %56 : vector<1x64xf32>
    %58 = math.rsqrt %57 : vector<1x64xf32>
    %c0_38 = arith.constant 0 : index
    %c0_39 = arith.constant 0 : index
    %59 = vector.load %arg5[%c0_38, %c0_39] : memref<1x64xf32, #tpu.memory_space<vmem>>, vector<1x64xf32>
    %60 = arith.mulf %58, %59 : vector<1x64xf32>
    %61 = vector.broadcast %60 : vector<1x64xf32> to vector<32x64xf32>
    %62 = arith.mulf %55, %61 : vector<32x64xf32>
    %c0_40 = arith.constant 0 : index
    %c0_41 = arith.constant 0 : index
    %63 = vector.load %arg6[%c0_40, %c0_41] : memref<1x64xf32, #tpu.memory_space<vmem>>, vector<1x64xf32>
    %64 = vector.broadcast %63 : vector<1x64xf32> to vector<32x64xf32>
    %65 = arith.addf %62, %64 : vector<32x64xf32>
    %c0_42 = arith.constant 0 : index
    %c64 = arith.constant 64 : index
    %66 = vector.load %arg0[%c0_42, %c64] : memref<32x192xf32, #tpu.memory_space<vmem>>, vector<32x64xf32>
    %67 = arith.addf %65, %66 : vector<32x64xf32>
    %cst_43 = arith.constant 0.000000e+00 : f32
    %68 = vector.broadcast %cst_43 : f32 to vector<32x64xf32>
    %69 = arith.maximumf %67, %68 : vector<32x64xf32>
    %c0_44 = arith.constant 0 : index
    %c0_45 = arith.constant 0 : index
    %70 = vector.load %arg7[%c0_44, %c0_45] : memref<32x64xf32, #tpu.memory_space<vmem>>, vector<32x64xf32>
    tpu.vector_store %arg7[%c0_44, %c0_45], %69 {strides = array<i32>} : memref<32x64xf32, #tpu.memory_space<vmem>>, vector<32x64xf32>,
    return
  }
}

module attributes {stable_mosaic.version = 11 : i64} {
  func.func @kernel(%arg0: memref<16x192xf32, #tpu.memory_space<vmem>>, %arg1: memref<192x128xbf16, #tpu.memory_space<vmem>>, %arg2: memref<1x128xf32, #tpu.memory_space<vmem>>, %arg3: memref<1x128xf32, #tpu.memory_space<vmem>>, %arg4: memref<384x128xbf16, #tpu.memory_space<vmem>>, %arg5: memref<1x128xf32, #tpu.memory_space<vmem>>, %arg6: memref<1x128xf32, #tpu.memory_space<vmem>>, %arg7: memref<64x128xbf16, #tpu.memory_space<vmem>>, %arg8: memref<1x128xf32, #tpu.memory_space<vmem>>, %arg9: memref<1x128xf32, #tpu.memory_space<vmem>>, %arg10: memref<16x128xf32, #tpu.memory_space<vmem>>, %arg11: memref<2x10x128xf32, #tpu.memory_space<vmem>>) attributes {dimension_semantics = [], scalar_prefetch = 0 : i64, scratch_operands = 1 : i64, tpu.core_type = #tpu.core_type<tc>} {
    %c0 = arith.constant 0 : index
    %c0_0 = arith.constant 0 : index
    %0 = vector.load %arg0[%c0, %c0_0] : memref<16x192xf32, #tpu.memory_space<vmem>>, vector<16x192xf32>
    %1 = arith.truncf %0 : vector<16x192xf32> to vector<16x192xbf16>
    %c0_1 = arith.constant 0 : index
    %c0_2 = arith.constant 0 : index
    %2 = vector.load %arg1[%c0_1, %c0_2] : memref<192x128xbf16, #tpu.memory_space<vmem>>, vector<192x128xbf16>
    %cst = arith.constant dense<0.000000e+00> : vector<16x128xf32>
    %3 = tpu.matmul %1, %2, %cst {dimension_numbers = #tpu.dot_dimension_numbers<[1], [0], [0], [1], [0, 0, 1, 1], [], []>} : vector<16x192xbf16>, vector<192x128xbf16>, vector<16x128xf32> -> vector<16x128xf32>
    %cst_3 = arith.constant 0.000000e+00 : f32
    %4 = vector.broadcast %cst_3 : f32 to vector<2x1x128xf32>
    %c0_4 = arith.constant 0 : index
    %c0_5 = arith.constant 0 : index
    %c0_6 = arith.constant 0 : index
    %5 = vector.load %arg11[%c0_4, %c0_5, %c0_6] : memref<2x10x128xf32, #tpu.memory_space<vmem>>, vector<2x1x128xf32>
    tpu.vector_store %arg11[%c0_4, %c0_5, %c0_6], %4 {strides = array<i32>} : memref<2x10x128xf32, #tpu.memory_space<vmem>>, vector<2x1x128xf32>,
    %cst_7 = arith.constant 0.000000e+00 : f32
    %6 = vector.broadcast %cst_7 : f32 to vector<2x1x128xf32>
    %c0_8 = arith.constant 0 : index
    %c9 = arith.constant 9 : index
    %c0_9 = arith.constant 0 : index
    %7 = vector.load %arg11[%c0_8, %c9, %c0_9] : memref<2x10x128xf32, #tpu.memory_space<vmem>>, vector<2x1x128xf32>
    tpu.vector_store %arg11[%c0_8, %c9, %c0_9], %6 {strides = array<i32>} : memref<2x10x128xf32, #tpu.memory_space<vmem>>, vector<2x1x128xf32>,
    %cst_10 = arith.constant dense<0.000000e+00> : vector<128xf32>
    %8 = vector.multi_reduction <add>, %3, %cst_10 [0] : vector<16x128xf32> to vector<128xf32>
    %9 = vector.shape_cast %8 : vector<128xf32> to vector<1x128xf32>
    %10 = arith.mulf %3, %3 : vector<16x128xf32>
    %cst_11 = arith.constant dense<0.000000e+00> : vector<128xf32>
    %11 = vector.multi_reduction <add>, %10, %cst_11 [0] : vector<16x128xf32> to vector<128xf32>
    %12 = vector.shape_cast %11 : vector<128xf32> to vector<1x128xf32>
    %cst_12 = arith.constant 6.250000e-02 : f32
    %13 = vector.broadcast %cst_12 : f32 to vector<1x128xf32>
    %14 = arith.mulf %9, %13 : vector<1x128xf32>
    %cst_13 = arith.constant 6.250000e-02 : f32
    %15 = vector.broadcast %cst_13 : f32 to vector<1x128xf32>
    %16 = arith.mulf %12, %15 : vector<1x128xf32>
    %17 = arith.mulf %14, %14 : vector<1x128xf32>
    %18 = arith.subf %16, %17 : vector<1x128xf32>
    %19 = vector.broadcast %14 : vector<1x128xf32> to vector<16x128xf32>
    %20 = arith.subf %3, %19 : vector<16x128xf32>
    %cst_14 = arith.constant 9.99999974E-6 : f32
    %21 = vector.broadcast %cst_14 : f32 to vector<1x128xf32>
    %22 = arith.addf %18, %21 : vector<1x128xf32>
    %23 = math.rsqrt %22 : vector<1x128xf32>
    %c0_15 = arith.constant 0 : index
    %c0_16 = arith.constant 0 : index
    %24 = vector.load %arg2[%c0_15, %c0_16] : memref<1x128xf32, #tpu.memory_space<vmem>>, vector<1x128xf32>
    %25 = arith.mulf %23, %24 : vector<1x128xf32>
    %26 = vector.broadcast %25 : vector<1x128xf32> to vector<16x128xf32>
    %27 = arith.mulf %20, %26 : vector<16x128xf32>
    %c0_17 = arith.constant 0 : index
    %c0_18 = arith.constant 0 : index
    %28 = vector.load %arg3[%c0_17, %c0_18] : memref<1x128xf32, #tpu.memory_space<vmem>>, vector<1x128xf32>
    %29 = vector.broadcast %28 : vector<1x128xf32> to vector<16x128xf32>
    %30 = arith.addf %27, %29 : vector<16x128xf32>
    %cst_19 = arith.constant 0.000000e+00 : f32
    %31 = vector.broadcast %cst_19 : f32 to vector<16x128xf32>
    %32 = arith.maximumf %30, %31 : vector<16x128xf32>
    %33 = vector.shape_cast %32 : vector<16x128xf32> to vector<2x8x128xf32>
    %c0_20 = arith.constant 0 : index
    %c1 = arith.constant 1 : index
    %c0_21 = arith.constant 0 : index
    %34 = vector.load %arg11[%c0_20, %c1, %c0_21] : memref<2x10x128xf32, #tpu.memory_space<vmem>>, vector<2x8x128xf32>
    tpu.vector_store %arg11[%c0_20, %c1, %c0_21], %33 {strides = array<i32>} : memref<2x10x128xf32, #tpu.memory_space<vmem>>, vector<2x8x128xf32>,
    %c0_22 = arith.constant 0 : index
    %c0_23 = arith.constant 0 : index
    %c0_24 = arith.constant 0 : index
    %35 = vector.load %arg11[%c0_22, %c0_23, %c0_24] : memref<2x10x128xf32, #tpu.memory_space<vmem>>, vector<2x8x128xf32>
    %c0_25 = arith.constant 0 : index
    %c1_26 = arith.constant 1 : index
    %c0_27 = arith.constant 0 : index
    %36 = vector.load %arg11[%c0_25, %c1_26, %c0_27] : memref<2x10x128xf32, #tpu.memory_space<vmem>>, vector<2x8x128xf32>
    %c0_28 = arith.constant 0 : index
    %c2 = arith.constant 2 : index
    %c0_29 = arith.constant 0 : index
    %37 = vector.load %arg11[%c0_28, %c2, %c0_29] : memref<2x10x128xf32, #tpu.memory_space<vmem>>, vector<2x8x128xf32>
    %38 = tpu.concatenate %35, %36, %37 in 2 : vector<2x8x128xf32>, vector<2x8x128xf32>, vector<2x8x128xf32> -> vector<2x8x384xf32>
    %39 = vector.shape_cast %38 : vector<2x8x384xf32> to vector<16x384xf32>
    %40 = arith.truncf %39 : vector<16x384xf32> to vector<16x384xbf16>
    %c0_30 = arith.constant 0 : index
    %c0_31 = arith.constant 0 : index
    %41 = vector.load %arg4[%c0_30, %c0_31] : memref<384x128xbf16, #tpu.memory_space<vmem>>, vector<384x128xbf16>
    %cst_32 = arith.constant dense<0.000000e+00> : vector<16x128xf32>
    %42 = tpu.matmul %40, %41, %cst_32 {dimension_numbers = #tpu.dot_dimension_numbers<[1], [0], [0], [1], [0, 0, 1, 1], [], []>} : vector<16x384xbf16>, vector<384x128xbf16>, vector<16x128xf32> -> vector<16x128xf32>
    %cst_33 = arith.constant dense<0.000000e+00> : vector<128xf32>
    %43 = vector.multi_reduction <add>, %42, %cst_33 [0] : vector<16x128xf32> to vector<128xf32>
    %44 = vector.shape_cast %43 : vector<128xf32> to vector<1x128xf32>
    %45 = arith.mulf %42, %42 : vector<16x128xf32>
    %cst_34 = arith.constant dense<0.000000e+00> : vector<128xf32>
    %46 = vector.multi_reduction <add>, %45, %cst_34 [0] : vector<16x128xf32> to vector<128xf32>
    %47 = vector.shape_cast %46 : vector<128xf32> to vector<1x128xf32>
    %cst_35 = arith.constant 6.250000e-02 : f32
    %48 = vector.broadcast %cst_35 : f32 to vector<1x128xf32>
    %49 = arith.mulf %44, %48 : vector<1x128xf32>
    %cst_36 = arith.constant 6.250000e-02 : f32
    %50 = vector.broadcast %cst_36 : f32 to vector<1x128xf32>
    %51 = arith.mulf %47, %50 : vector<1x128xf32>
    %52 = arith.mulf %49, %49 : vector<1x128xf32>
    %53 = arith.subf %51, %52 : vector<1x128xf32>
    %54 = vector.broadcast %49 : vector<1x128xf32> to vector<16x128xf32>
    %55 = arith.subf %42, %54 : vector<16x128xf32>
    %cst_37 = arith.constant 9.99999974E-6 : f32
    %56 = vector.broadcast %cst_37 : f32 to vector<1x128xf32>
    %57 = arith.addf %53, %56 : vector<1x128xf32>
    %58 = math.rsqrt %57 : vector<1x128xf32>
    %c0_38 = arith.constant 0 : index
    %c0_39 = arith.constant 0 : index
    %59 = vector.load %arg5[%c0_38, %c0_39] : memref<1x128xf32, #tpu.memory_space<vmem>>, vector<1x128xf32>
    %60 = arith.mulf %58, %59 : vector<1x128xf32>
    %61 = vector.broadcast %60 : vector<1x128xf32> to vector<16x128xf32>
    %62 = arith.mulf %55, %61 : vector<16x128xf32>
    %c0_40 = arith.constant 0 : index
    %c0_41 = arith.constant 0 : index
    %63 = vector.load %arg6[%c0_40, %c0_41] : memref<1x128xf32, #tpu.memory_space<vmem>>, vector<1x128xf32>
    %64 = vector.broadcast %63 : vector<1x128xf32> to vector<16x128xf32>
    %65 = arith.addf %62, %64 : vector<16x128xf32>
    %c0_42 = arith.constant 0 : index
    %c64 = arith.constant 64 : index
    %66 = vector.load %arg0[%c0_42, %c64] : memref<16x192xf32, #tpu.memory_space<vmem>>, vector<16x64xf32>
    %67 = arith.truncf %66 : vector<16x64xf32> to vector<16x64xbf16>
    %c0_43 = arith.constant 0 : index
    %c0_44 = arith.constant 0 : index
    %68 = vector.load %arg7[%c0_43, %c0_44] : memref<64x128xbf16, #tpu.memory_space<vmem>>, vector<64x128xbf16>
    %cst_45 = arith.constant dense<0.000000e+00> : vector<16x128xf32>
    %69 = tpu.matmul %67, %68, %cst_45 {dimension_numbers = #tpu.dot_dimension_numbers<[1], [0], [0], [1], [0, 0, 1, 1], [], []>} : vector<16x64xbf16>, vector<64x128xbf16>, vector<16x128xf32> -> vector<16x128xf32>
    %cst_46 = arith.constant dense<0.000000e+00> : vector<128xf32>
    %70 = vector.multi_reduction <add>, %69, %cst_46 [0] : vector<16x128xf32> to vector<128xf32>
    %71 = vector.shape_cast %70 : vector<128xf32> to vector<1x128xf32>
    %72 = arith.mulf %69, %69 : vector<16x128xf32>
    %cst_47 = arith.constant dense<0.000000e+00> : vector<128xf32>
    %73 = vector.multi_reduction <add>, %72, %cst_47 [0] : vector<16x128xf32> to vector<128xf32>
    %74 = vector.shape_cast %73 : vector<128xf32> to vector<1x128xf32>
    %cst_48 = arith.constant 6.250000e-02 : f32
    %75 = vector.broadcast %cst_48 : f32 to vector<1x128xf32>
    %76 = arith.mulf %71, %75 : vector<1x128xf32>
    %cst_49 = arith.constant 6.250000e-02 : f32
    %77 = vector.broadcast %cst_49 : f32 to vector<1x128xf32>
    %78 = arith.mulf %74, %77 : vector<1x128xf32>
    %79 = arith.mulf %76, %76 : vector<1x128xf32>
    %80 = arith.subf %78, %79 : vector<1x128xf32>
    %81 = vector.broadcast %76 : vector<1x128xf32> to vector<16x128xf32>
    %82 = arith.subf %69, %81 : vector<16x128xf32>
    %cst_50 = arith.constant 9.99999974E-6 : f32
    %83 = vector.broadcast %cst_50 : f32 to vector<1x128xf32>
    %84 = arith.addf %80, %83 : vector<1x128xf32>
    %85 = math.rsqrt %84 : vector<1x128xf32>
    %c0_51 = arith.constant 0 : index
    %c0_52 = arith.constant 0 : index
    %86 = vector.load %arg8[%c0_51, %c0_52] : memref<1x128xf32, #tpu.memory_space<vmem>>, vector<1x128xf32>
    %87 = arith.mulf %85, %86 : vector<1x128xf32>
    %88 = vector.broadcast %87 : vector<1x128xf32> to vector<16x128xf32>
    %89 = arith.mulf %82, %88 : vector<16x128xf32>
    %c0_53 = arith.constant 0 : index
    %c0_54 = arith.constant 0 : index
    %90 = vector.load %arg9[%c0_53, %c0_54] : memref<1x128xf32, #tpu.memory_space<vmem>>, vector<1x128xf32>
    %91 = vector.broadcast %90 : vector<1x128xf32> to vector<16x128xf32>
    %92 = arith.addf %89, %91 : vector<16x128xf32>
    %93 = arith.addf %65, %92 : vector<16x128xf32>
    %cst_55 = arith.constant 0.000000e+00 : f32
    %94 = vector.broadcast %cst_55 : f32 to vector<16x128xf32>
    %95 = arith.maximumf %93, %94 : vector<16x128xf32>
    %c0_56 = arith.constant 0 : index
    %c0_57 = arith.constant 0 : index
    %96 = vector.load %arg10[%c0_56, %c0_57] : memref<16x128xf32, #tpu.memory_space<vmem>>, vector<16x128xf32>
    tpu.vector_store %arg10[%c0_56, %c0_57], %95 {strides = array<i32>} : memref<16x128xf32, #tpu.memory_space<vmem>>, vector<16x128xf32>,
    return
  }
}

</mosaic_0001>

<llo_original>
// kernel: _lambda_.2
$region0: #{_lambda_.2}
  #allocation0 [shape = 'u32[]', space=smem, size = 0x4, offset = 0x4, fixed_abs, tag = 'smem constant byte address 0x4 - core index']
  #allocation1 [shape = 'u32[144,128]{1,0:T(1,128)}', space=vmem, size = 0x12000, scoped, tag = 'internal scratch']
  #allocation2 [shape = 'f32[2,18,64]{2,1,0:T(8,128)}', space=vmem, size = 0x6000, scoped, tag = 'scratch operand']
  %s0 = inlined_call_operand.vmem [shape: f32[32,192], index: 0, kind: input, shape index: {}]
  %s1 = inlined_call_operand.vmem [shape: bf16[192,64], index: 1, kind: input, shape index: {}]
  %s2 = inlined_call_operand.vmem [shape: f32[1,64], index: 2, kind: input, shape index: {}, may-alias: {2,5}]
  %s3 = inlined_call_operand.vmem [shape: f32[1,64], index: 3, kind: input, shape index: {}, may-alias: {3,6}]
  %s4 = inlined_call_operand.vmem [shape: bf16[192,64], index: 4, kind: input, shape index: {}]
  %s5 = inlined_call_operand.vmem [shape: f32[1,64], index: 5, kind: input, shape index: {}, may-alias: {2,5}]
  %s6 = inlined_call_operand.vmem [shape: f32[1,64], index: 6, kind: input, shape index: {}, may-alias: {3,6}]
  %s7 = inlined_call_operand.vmem [shape: f32[32,64], index: 7, kind: output, shape index: {}]
  %s8 = sld [smem:[#allocation0]]
  $region38: #{_lambda_.2} parent=0
    _
  %s10 = ssub.s32 1, %s8
  %s11 = scalar_select 0, %s10, %s8
  // Predicated region
  $region2: #{_lambda_.2} parent=0 // pred_check
    _
  $region3: #{_lambda_.2} parent=0 // pred_check_branch
    %13 = sbr.rel (0) target = $region5
  $region4: #{_lambda_.2} parent=0 // pred_region
    _
  $region5: #{_lambda_.2} parent=0 // pred_fallthru
    _
  // Predicated region
  $region6: #{_lambda_.2} parent=0 // pred_check
    _
  $region7: #{_lambda_.2} parent=0 // pred_check_branch
    %15 = sbr.rel (0) target = $region9
  $region8: #{_lambda_.2} parent=0 // pred_region
    _
  $region9: #{_lambda_.2} parent=0 // pred_fallthru
    _
  // Predicated region
  $region10: #{_lambda_.2} parent=0 // pred_check
    _
  $region11: #{_lambda_.2} parent=0 // pred_check_branch
    %17 = sbr.rel (0) target = $region13
  $region12: #{_lambda_.2} parent=0 // pred_region
    _
  $region13: #{_lambda_.2} parent=0 // pred_fallthru
    _
  // Predicated region
  $region14: #{_lambda_.2} parent=0 // pred_check
    _
  $region15: #{_lambda_.2} parent=0 // pred_check_branch
    %19 = sbr.rel (0) target = $region17
  $region16: #{_lambda_.2} parent=0 // pred_region
    _
  $region17: #{_lambda_.2} parent=0 // pred_fallthru
    _
  // Predicated region
  $region18: #{_lambda_.2} parent=0 // pred_check
    _
  $region19: #{_lambda_.2} parent=0 // pred_check_branch
    %21 = sbr.rel (0) target = $region21
  $region20: #{_lambda_.2} parent=0 // pred_region
    _
  $region21: #{_lambda_.2} parent=0 // pred_fallthru
    _
  // Predicated region
  $region22: #{_lambda_.2} parent=0 // pred_check
    _
  $region23: #{_lambda_.2} parent=0 // pred_check_branch
    %23 = sbr.rel (0) target = $region25
  $region24: #{_lambda_.2} parent=0 // pred_region
    _
  $region25: #{_lambda_.2} parent=0 // pred_fallthru
    _
  // Predicated region
  $region26: #{_lambda_.2} parent=0 // pred_check
    _
  $region27: #{_lambda_.2} parent=0 // pred_check_branch
    %25 = sbr.rel (0) target = $region29
  $region28: #{_lambda_.2} parent=0 // pred_region
    _
  $region29: #{_lambda_.2} parent=0 // pred_fallthru
    _
  %v27 = vld [vmem:[%s0] sm:$0xff]
  %v28 = vld [vmem:[%s0 + $0x8] sm:$0xff]
  %v29 = vld [vmem:[%s0 + $0x10] sm:$0xff]
  %v30 = vld [vmem:[%s0 + $0x18] sm:$0xff]
  %v31 = vld [vmem:[%s0 + $0x20] sm:$0xff]
  %v32 = vld [vmem:[%s0 + $0x28] sm:$0xff]
  %v33 = vld [vmem:[%s0 + $0x30] sm:$0xff]
  %v34 = vld [vmem:[%s0 + $0x38] sm:$0xff]
  %v35 = vpack.c.bf16 %v29, %v27
  %v36 = vpack.c.bf16 %v30, %v28
  %v37 = vpack.c.bf16 %v33, %v31
  %v38 = vpack.c.bf16 %v34, %v32
  %v39 = vld [vmem:[%s1] sm:$0xf]
  %v40 = vld [vmem:[%s1 + $0x4] sm:$0xf]
  %v41 = vld [vmem:[%s1 + $0x8] sm:$0xf]
  %v42 = vld [vmem:[%s1 + $0xc] sm:$0xf]
  %v43 = vld [vmem:[%s1 + $0x10] sm:$0xf]
  %v44 = vld [vmem:[%s1 + $0x14] sm:$0xf]
  %v45 = vld [vmem:[%s1 + $0x18] sm:$0xf]
  %v46 = vld [vmem:[%s1 + $0x1c] sm:$0xf]
  %v47 = vld [vmem:[%s1 + $0x20] sm:$0xf]
  %v48 = vld [vmem:[%s1 + $0x24] sm:$0xf]
  %v49 = vld [vmem:[%s1 + $0x28] sm:$0xf]
  %v50 = vld [vmem:[%s1 + $0x2c] sm:$0xf]
  %v51 = vld [vmem:[%s1 + $0x30] sm:$0xf]
  %v52 = vld [vmem:[%s1 + $0x34] sm:$0xf]
  %v53 = vld [vmem:[%s1 + $0x38] sm:$0xf]
  %v54 = vld [vmem:[%s1 + $0x3c] sm:$0xf]
  %v55 = vld [vmem:[%s1 + $0x40] sm:$0xf]
  %v56 = vld [vmem:[%s1 + $0x44] sm:$0xf]
  %v57 = vld [vmem:[%s1 + $0x48] sm:$0xf]
  %v58 = vld [vmem:[%s1 + $0x4c] sm:$0xf]
  %v59 = vld [vmem:[%s1 + $0x50] sm:$0xf]
  %v60 = vld [vmem:[%s1 + $0x54] sm:$0xf]
  %v61 = vld [vmem:[%s1 + $0x58] sm:$0xf]
  %v62 = vld [vmem:[%s1 + $0x5c] sm:$0xf]
  %v87 = vunpack.c.l.b16 %v39
  %v88 = vunpack.c.l.b16 %v40
  %v89 = vunpack.c.l.b16 %v41
  %v90 = vunpack.c.l.b16 %v42
  %v91 = vunpack.c.l.b16 %v43
  %v92 = vunpack.c.l.b16 %v44
  %v93 = vunpack.c.l.b16 %v45
  %v94 = vunpack.c.l.b16 %v46
  %v95 = vunpack.c.l.b16 %v47
  %v96 = vunpack.c.l.b16 %v48
  %v97 = vunpack.c.l.b16 %v49
  %v98 = vunpack.c.l.b16 %v50
  %v99 = vunpack.c.l.b16 %v51
  %v100 = vunpack.c.l.b16 %v52
  %v101 = vunpack.c.l.b16 %v53
  %v102 = vunpack.c.l.b16 %v54
  %v103 = vunpack.c.l.b16 %v55
  %v104 = vunpack.c.l.b16 %v56
  %v105 = vunpack.c.l.b16 %v57
  %v106 = vunpack.c.l.b16 %v58
  %v107 = vunpack.c.l.b16 %v59
  %v108 = vunpack.c.l.b16 %v60
  %v109 = vunpack.c.l.b16 %v61
  %v110 = vunpack.c.l.b16 %v62
  %v111 = vpack.c.b16 %v88, %v87
  %v112 = vpack.c.b16 %v90, %v89
  %v113 = vpack.c.b16 %v92, %v91
  %v114 = vpack.c.b16 %v94, %v93
  %v115 = vpack.c.b16 %v96, %v95
  %v116 = vpack.c.b16 %v98, %v97
  %v117 = vpack.c.b16 %v100, %v99
  %v118 = vpack.c.b16 %v102, %v101
  %v119 = vpack.c.b16 %v104, %v103
  %v120 = vpack.c.b16 %v106, %v105
  %v121 = vpack.c.b16 %v108, %v107
  %v122 = vpack.c.b16 %v110, %v109
  %vm135 = vcmask 523264
  %v137 = vsel %vm135, %v36, 0
  %v140 = vsel %vm135, %v38, 0
  %142 = vmatprep.subr.bf16.mxu0 0
  %143 = vmatpush1.bf16.msra.mxu0 %v118
  %144 = vmatprep.subr.bf16.mxu0 0
  %145 = vmatpush1.bf16.msra.mxu0 %v117
  %146 = vmatprep.subr.bf16.mxu0 0
  %147 = vmatpush1.bf16.msra.mxu0 %v116
  %148 = vmatprep.subr.bf16.mxu0 0
  %149 = vmatpush1.bf16.msra.mxu0 %v115
  %150 = vmatprep.subr.bf16.mxu0 0
  %151 = vmatpush1.bf16.msra.mxu0 %v114
  %152 = vmatprep.subr.bf16.mxu0 0
  %153 = vmatpush1.bf16.msra.mxu0 %v113
  %154 = vmatprep.subr.bf16.mxu0 0
  %155 = vmatpush1.bf16.msra.mxu0 %v112
  %156 = vmatprep.subr.bf16.mxu0 0
  %157 = vmatpush1.bf16.msra.mxu0 %v111
  %158 = vmatprep.subr.bf16.mxu0 0
  %159 = vmatpush2.bf16.msra.mxu0 0
  %160 = vmatprep.subr.bf16.mxu0 0
  %161 = vmatpush2.bf16.msra.mxu0 0
  %162 = vmatprep.subr.bf16.mxu0 0
  %163 = vmatpush2.bf16.msra.mxu0 0
  %164 = vmatprep.subr.bf16.mxu0 0
  %165 = vmatpush2.bf16.msra.mxu0 0
  %166 = vmatprep.subr.bf16.mxu0 0
  %167 = vmatpush2.bf16.msra.mxu0 %v122
  %168 = vmatprep.subr.bf16.mxu0 0
  %169 = vmatpush2.bf16.msra.mxu0 %v121
  %170 = vmatprep.subr.bf16.mxu0 0
  %171 = vmatpush2.bf16.msra.mxu0 %v120
  %172 = vmatprep.subr.bf16.mxu0 0
  %173 = vmatpush2.bf16.msra.mxu0 %v119
  %174 = vmatprep.mubr.bf16.mxu0 %v137
  %175 = vmatmul.mubr.bf16.gmra.mxu0 %v35
  %v176 = vpop.f32.mrf.mxu0
  %v177 = vadd.f32 0.0, %v176
  %v178 = vpop.f32.mrf.mxu0
  %v179 = vpop.f32.mrf.mxu0
  %v180 = vadd.f32 0.0, %v179
  %v181 = vpop.f32.mrf.mxu0
  %182 = vmatprep.mubr.bf16.mxu0 %v140
  %183 = vmatmul.mubr.bf16.gmra.mxu0 %v37
  %v184 = vpop.f32.mrf.mxu0
  %v185 = vadd.f32 0.0, %v184
  %v186 = vpop.f32.mrf.mxu0
  %v187 = vpop.f32.mrf.mxu0
  %v188 = vadd.f32 0.0, %v187
  %v189 = vpop.f32.mrf.mxu0
  %190 = vdwg.mxu0
  %vm191 = vcmask 516096
  %192 = vst.msk [vmem:[#allocation2] sm:$0x1] %vm191, 0.0
  %193 = vst.msk [vmem:[#allocation2 + $0x18] sm:$0x1] %vm191, 0.0
  %194 = vst.msk [vmem:[#allocation2 + $0x11] sm:$0x1] %vm191, 0.0
  %195 = vst.msk [vmem:[#allocation2 + $0x29] sm:$0x1] %vm191, 0.0
  %v196 = vsel %vm135, %v177, 0.0
  %v197 = vsel %vm135, %v180, 0.0
  %v198 = vadd.f32 %v196, %v197
  %v199 = vsel %vm135, %v185, 0.0
  %v200 = vadd.f32 %v198, %v199
  %v201 = vsel %vm135, %v188, 0.0
  %v202 = vadd.f32 %v200, %v201
  %v203 = vrot.slane %v202, 4
  %v204 = vadd.f32 %v202, %v203
  %v205 = vrot.slane %v204, 2
  %v206 = vadd.f32 %v204, %v205
  %v207 = vrot.slane %v206, 1
  %v208 = vadd.f32 %v206, %v207
  %v209 = vmul.f32 %v177, %v177
  %v210 = vmul.f32 %v180, %v180
  %v211 = vmul.f32 %v185, %v185
  %v212 = vmul.f32 %v188, %v188
  %v213 = vsel %vm135, %v209, 0.0
  %v214 = vsel %vm135, %v210, 0.0
  %v215 = vadd.f32 %v213, %v214
  %v216 = vsel %vm135, %v211, 0.0
  %v217 = vadd.f32 %v215, %v216
  %v218 = vsel %vm135, %v212, 0.0
  %v219 = vadd.f32 %v217, %v218
  %v220 = vrot.slane %v219, 4
  %v221 = vadd.f32 %v219, %v220
  %v222 = vrot.slane %v221, 2
  %v223 = vadd.f32 %v221, %v222
  %v224 = vrot.slane %v223, 1
  %v225 = vadd.f32 %v223, %v224
  %v226 = vmul.f32 %v208, 0.03125
  %v227 = vmul.f32 %v225, 0.03125
  %v228 = vmul.f32 %v226, %v226
  %v229 = vsub.f32 %v227, %v228
  %v230 = vsub.f32 %v177, %v226
  %v231 = vsub.f32 %v180, %v226
  %v232 = vsub.f32 %v185, %v226
  %v233 = vsub.f32 %v188, %v226
  %v234 = vadd.f32 %v229, 1e-05
  %v235 = vrsqrt.pop %v234
  %v236 = vld [vmem:[%s2] sm:$0x1]
  %v237 = vmul.f32 %v235, %v236
  %v238 = vlaneseq
  %v239 = vshrl.u32 %v238, 7
  %v240 = vsub.s32 0, %v239
  %v241 = vrot.slane %v237, %v240
  %v242 = vmul.f32 %v230, %v241
  %v243 = vmul.f32 %v231, %v241
  %v244 = vmul.f32 %v232, %v241
  %v245 = vmul.f32 %v233, %v241
  %v246 = vld [vmem:[%s3] sm:$0x1]
  %v248 = vlaneseq
  %v249 = vshrl.u32 %v248, 7
  %v250 = vsub.s32 0, %v249
  %v251 = vrot.slane %v246, %v250
  %v253 = vadd.f32 %v242, %v251
  %v254 = vadd.f32 %v243, %v251
  %v255 = vadd.f32 %v244, %v251
  %v256 = vadd.f32 %v245, %v251
  %v257 = vmax.f32 %v253, 0.0
  %v258 = vmax.f32 %v254, 0.0
  %v259 = vmax.f32 %v255, 0.0
  %v260 = vmax.f32 %v256, 0.0
  %261 = vst.msk [vmem:[#allocation2 + $0x1] sm:$0xff] %vm135, %v257
  %262 = vst.msk [vmem:[#allocation2 + $0x9] sm:$0xff] %vm135, %v258
  %263 = vst.msk [vmem:[#allocation2 + $0x19] sm:$0xff] %vm135, %v259
  %264 = vst.msk [vmem:[#allocation2 + $0x21] sm:$0xff] %vm135, %v260
  %v265 = vld [vmem:[#allocation2] sm:$0xff]
  %v266 = vld [vmem:[#allocation2 + $0x8] sm:$0xff]
  %v267 = vld [vmem:[#allocation2 + $0x18] sm:$0xff]
  %v268 = vld [vmem:[#allocation2 + $0x20] sm:$0xff]
  %v269 = vld [vmem:[#allocation2 + $0x1] sm:$0xff]
  %v270 = vld [vmem:[#allocation2 + $0x9] sm:$0xff]
  %v271 = vld [vmem:[#allocation2 + $0x19] sm:$0xff]
  %v272 = vld [vmem:[#allocation2 + $0x21] sm:$0xff]
  %v273 = vld [vmem:[#allocation2 + $0x2] sm:$0xff]
  %v274 = vld [vmem:[#allocation2 + $0xa] sm:$0xff]
  %v275 = vld [vmem:[#allocation2 + $0x1a] sm:$0xff]
  %v276 = vld [vmem:[#allocation2 + $0x22] sm:$0xff]
  %281 = vrot.lane.b32.xlu0 %v269, 64
  %v282 = vpop.permute.xlu0 %281
  %283 = vrot.lane.b32.xlu0 %v270, 64
  %v284 = vpop.permute.xlu0 %283
  %285 = vrot.lane.b32.xlu0 %v271, 64
  %v286 = vpop.permute.xlu0 %285
  %287 = vrot.lane.b32.xlu0 %v272, 64
  %v288 = vpop.permute.xlu0 %287
  %v293 = vsel %vm135, %v265, %v282
  %v294 = vsel %vm135, %v266, %v284
  %v295 = vsel %vm135, %v267, %v286
  %v296 = vsel %vm135, %v268, %v288
  %v297 = vpack.c.bf16 %v294, %v293
  %v298 = vpack.c.bf16 %v274, %v273
  %v299 = vpack.c.bf16 %v296, %v295
  %v300 = vpack.c.bf16 %v276, %v275
  %v301 = vld [vmem:[%s4] sm:$0xf]
  %v302 = vld [vmem:[%s4 + $0x4] sm:$0xf]
  %v303 = vld [vmem:[%s4 + $0x8] sm:$0xf]
  %v304 = vld [vmem:[%s4 + $0xc] sm:$0xf]
  %v305 = vld [vmem:[%s4 + $0x10] sm:$0xf]
  %v306 = vld [vmem:[%s4 + $0x14] sm:$0xf]
  %v307 = vld [vmem:[%s4 + $0x18] sm:$0xf]
  %v308 = vld [vmem:[%s4 + $0x1c] sm:$0xf]
  %v309 = vld [vmem:[%s4 + $0x20] sm:$0xf]
  %v310 = vld [vmem:[%s4 + $0x24] sm:$0xf]
  %v311 = vld [vmem:[%s4 + $0x28] sm:$0xf]
  %v312 = vld [vmem:[%s4 + $0x2c] sm:$0xf]
  %v313 = vld [vmem:[%s4 + $0x30] sm:$0xf]
  %v314 = vld [vmem:[%s4 + $0x34] sm:$0xf]
  %v315 = vld [vmem:[%s4 + $0x38] sm:$0xf]
  %v316 = vld [vmem:[%s4 + $0x3c] sm:$0xf]
  %v317 = vld [vmem:[%s4 + $0x40] sm:$0xf]
  %v318 = vld [vmem:[%s4 + $0x44] sm:$0xf]
  %v319 = vld [vmem:[%s4 + $0x48] sm:$0xf]
  %v320 = vld [vmem:[%s4 + $0x4c] sm:$0xf]
  %v321 = vld [vmem:[%s4 + $0x50] sm:$0xf]
  %v322 = vld [vmem:[%s4 + $0x54] sm:$0xf]
  %v323 = vld [vmem:[%s4 + $0x58] sm:$0xf]
  %v324 = vld [vmem:[%s4 + $0x5c] sm:$0xf]
  %v349 = vunpack.c.l.b16 %v301
  %v350 = vunpack.c.l.b16 %v302
  %v351 = vunpack.c.l.b16 %v303
  %v352 = vunpack.c.l.b16 %v304
  %v353 = vunpack.c.l.b16 %v305
  %v354 = vunpack.c.l.b16 %v306
  %v355 = vunpack.c.l.b16 %v307
  %v356 = vunpack.c.l.b16 %v308
  %v357 = vunpack.c.l.b16 %v309
  %v358 = vunpack.c.l.b16 %v310
  %v359 = vunpack.c.l.b16 %v311
  %v360 = vunpack.c.l.b16 %v312
  %v361 = vunpack.c.l.b16 %v313
  %v362 = vunpack.c.l.b16 %v314
  %v363 = vunpack.c.l.b16 %v315
  %v364 = vunpack.c.l.b16 %v316
  %v365 = vunpack.c.l.b16 %v317
  %v366 = vunpack.c.l.b16 %v318
  %v367 = vunpack.c.l.b16 %v319
  %v368 = vunpack.c.l.b16 %v320
  %v369 = vunpack.c.l.b16 %v321
  %v370 = vunpack.c.l.b16 %v322
  %v371 = vunpack.c.l.b16 %v323
  %v372 = vunpack.c.l.b16 %v324
  %v373 = vpack.c.b16 %v350, %v349
  %v374 = vpack.c.b16 %v352, %v351
  %v375 = vpack.c.b16 %v354, %v353
  %v376 = vpack.c.b16 %v356, %v355
  %v377 = vpack.c.b16 %v358, %v357
  %v378 = vpack.c.b16 %v360, %v359
  %v379 = vpack.c.b16 %v362, %v361
  %v380 = vpack.c.b16 %v364, %v363
  %v381 = vpack.c.b16 %v366, %v365
  %v382 = vpack.c.b16 %v368, %v367
  %v383 = vpack.c.b16 %v370, %v369
  %v384 = vpack.c.b16 %v372, %v371
  %v398 = vsel %vm135, %v298, 0
  %v401 = vsel %vm135, %v300, 0
  %403 = vmatprep.subr.bf16.mxu0 0
  %404 = vmatpush1.bf16.msra.mxu0 %v380
  %405 = vmatprep.subr.bf16.mxu0 0
  %406 = vmatpush1.bf16.msra.mxu0 %v379
  %407 = vmatprep.subr.bf16.mxu0 0
  %408 = vmatpush1.bf16.msra.mxu0 %v378
  %409 = vmatprep.subr.bf16.mxu0 0
  %410 = vmatpush1.bf16.msra.mxu0 %v377
  %411 = vmatprep.subr.bf16.mxu0 0
  %412 = vmatpush1.bf16.msra.mxu0 %v376
  %413 = vmatprep.subr.bf16.mxu0 0
  %414 = vmatpush1.bf16.msra.mxu0 %v375
  %415 = vmatprep.subr.bf16.mxu0 0
  %416 = vmatpush1.bf16.msra.mxu0 %v374
  %417 = vmatprep.subr.bf16.mxu0 0
  %418 = vmatpush1.bf16.msra.mxu0 %v373
  %419 = vmatprep.subr.bf16.mxu0 0
  %420 = vmatpush2.bf16.msra.mxu0 0
  %421 = vmatprep.subr.bf16.mxu0 0
  %422 = vmatpush2.bf16.msra.mxu0 0
  %423 = vmatprep.subr.bf16.mxu0 0
  %424 = vmatpush2.bf16.msra.mxu0 0
  %425 = vmatprep.subr.bf16.mxu0 0
  %426 = vmatpush2.bf16.msra.mxu0 0
  %427 = vmatprep.subr.bf16.mxu0 0
  %428 = vmatpush2.bf16.msra.mxu0 %v384
  %429 = vmatprep.subr.bf16.mxu0 0
  %430 = vmatpush2.bf16.msra.mxu0 %v383
  %431 = vmatprep.subr.bf16.mxu0 0
  %432 = vmatpush2.bf16.msra.mxu0 %v382
  %433 = vmatprep.subr.bf16.mxu0 0
  %434 = vmatpush2.bf16.msra.mxu0 %v381
  %435 = vmatprep.mubr.bf16.mxu0 %v398
  %436 = vmatmul.mubr.bf16.gmra.mxu0 %v297
  %v437 = vpop.f32.mrf.mxu0
  %v438 = vadd.f32 0.0, %v437
  %v439 = vpop.f32.mrf.mxu0
  %v440 = vpop.f32.mrf.mxu0
  %v441 = vadd.f32 0.0, %v440
  %v442 = vpop.f32.mrf.mxu0
  %443 = vmatprep.mubr.bf16.mxu0 %v401
  %444 = vmatmul.mubr.bf16.gmra.mxu0 %v299
  %v445 = vpop.f32.mrf.mxu0
  %v446 = vadd.f32 0.0, %v445
  %v447 = vpop.f32.mrf.mxu0
  %v448 = vpop.f32.mrf.mxu0
  %v449 = vadd.f32 0.0, %v448
  %v450 = vpop.f32.mrf.mxu0
  %451 = vdwg.mxu0
  %v452 = vsel %vm135, %v438, 0.0
  %v453 = vsel %vm135, %v441, 0.0
  %v454 = vadd.f32 %v452, %v453
  %v455 = vsel %vm135, %v446, 0.0
  %v456 = vadd.f32 %v454, %v455
  %v457 = vsel %vm135, %v449, 0.0
  %v458 = vadd.f32 %v456, %v457
  %v459 = vrot.slane %v458, 4
  %v460 = vadd.f32 %v458, %v459
  %v461 = vrot.slane %v460, 2
  %v462 = vadd.f32 %v460, %v461
  %v463 = vrot.slane %v462, 1
  %v464 = vadd.f32 %v462, %v463
  %v465 = vmul.f32 %v438, %v438
  %v466 = vmul.f32 %v441, %v441
  %v467 = vmul.f32 %v446, %v446
  %v468 = vmul.f32 %v449, %v449
  %v469 = vsel %vm135, %v465, 0.0
  %v470 = vsel %vm135, %v466, 0.0
  %v471 = vadd.f32 %v469, %v470
  %v472 = vsel %vm135, %v467, 0.0
  %v473 = vadd.f32 %v471, %v472
  %v474 = vsel %vm135, %v468, 0.0
  %v475 = vadd.f32 %v473, %v474
  %v476 = vrot.slane %v475, 4
  %v477 = vadd.f32 %v475, %v476
  %v478 = vrot.slane %v477, 2
  %v479 = vadd.f32 %v477, %v478
  %v480 = vrot.slane %v479, 1
  %v481 = vadd.f32 %v479, %v480
  %v482 = vmul.f32 %v464, 0.03125
  %v483 = vmul.f32 %v481, 0.03125
  %v484 = vmul.f32 %v482, %v482
  %v485 = vsub.f32 %v483, %v484
  %v486 = vsub.f32 %v438, %v482
  %v487 = vsub.f32 %v441, %v482
  %v488 = vsub.f32 %v446, %v482
  %v489 = vsub.f32 %v449, %v482
  %v490 = vadd.f32 %v485, 1e-05
  %v491 = vrsqrt.pop %v490
  %v492 = vld [vmem:[%s5] sm:$0x1]
  %v493 = vmul.f32 %v491, %v492
  %v494 = vlaneseq
  %v495 = vshrl.u32 %v494, 7
  %v496 = vsub.s32 0, %v495
  %v497 = vrot.slane %v493, %v496
  %v498 = vmul.f32 %v486, %v497
  %v499 = vmul.f32 %v487, %v497
  %v500 = vmul.f32 %v488, %v497
  %v501 = vmul.f32 %v489, %v497
  %v502 = vld [vmem:[%s6] sm:$0x1]
  %v504 = vlaneseq
  %v505 = vshrl.u32 %v504, 7
  %v506 = vsub.s32 0, %v505
  %v507 = vrot.slane %v502, %v506
  %v509 = vadd.f32 %v498, %v507
  %v510 = vadd.f32 %v499, %v507
  %v511 = vadd.f32 %v500, %v507
  %v512 = vadd.f32 %v501, %v507
  %v513 = vld [vmem:[%s0] sm:$0xff]
  %v514 = vld [vmem:[%s0 + $0x10] sm:$0xff]
  %v515 = vld [vmem:[%s0 + $0x20] sm:$0xff]
  %v516 = vld [vmem:[%s0 + $0x30] sm:$0xff]
  %521 = vrot.lane.b32.xlu0 %v513, 64
  %v522 = vpop.permute.xlu0 %521
  %523 = vrot.lane.b32.xlu0 %v514, 64
  %v524 = vpop.permute.xlu0 %523
  %525 = vrot.lane.b32.xlu0 %v515, 64
  %v526 = vpop.permute.xlu0 %525
  %527 = vrot.lane.b32.xlu0 %v516, 64
  %v528 = vpop.permute.xlu0 %527
  %v533 = vadd.f32 %v509, %v522
  %v534 = vadd.f32 %v510, %v524
  %v535 = vadd.f32 %v511, %v526
  %v536 = vadd.f32 %v512, %v528
  %v537 = vmax.f32 %v533, 0.0
  %v538 = vmax.f32 %v534, 0.0
  %v539 = vmax.f32 %v535, 0.0
  %v540 = vmax.f32 %v536, 0.0
  %541 = vst.msk [vmem:[%s7] sm:$0xff] %vm135, %v537
  %542 = vst.msk [vmem:[%s7 + $0x8] sm:$0xff] %vm135, %v538
  %543 = vst.msk [vmem:[%s7 + $0x10] sm:$0xff] %vm135, %v539
  %544 = vst.msk [vmem:[%s7 + $0x18] sm:$0xff] %vm135, %v540
  // Predicated region
  $region30: #{_lambda_.2} parent=0 // pred_check
    _
  $region31: #{_lambda_.2} parent=0 // pred_check_branch
    %546 = sbr.rel (0) target = $region33
  $region32: #{_lambda_.2} parent=0 // pred_region
    _
  $region33: #{_lambda_.2} parent=0 // pred_fallthru
    _
  // Predicated region
  $region34: #{_lambda_.2} parent=0 // pred_check
    _
  $region35: #{_lambda_.2} parent=0 // pred_check_branch
    %548 = sbr.rel (0) target = $region37
  $region36: #{_lambda_.2} parent=0 // pred_region
    _
  $region37: #{_lambda_.2} parent=0 // pred_fallthru
    _

// kernel: _lambda_.3
$region0: #{_lambda_.3}
  #allocation0 [shape = 'u32[]', space=smem, size = 0x4, offset = 0x4, fixed_abs, tag = 'smem constant byte address 0x4 - core index']
  #allocation1 [shape = 'u32[144,128]{1,0:T(1,128)}', space=vmem, size = 0x12000, scoped, tag = 'internal scratch']
  #allocation2 [shape = 'f32[2,10,128]{2,1,0:T(8,128)}', space=vmem, size = 0x4000, scoped, tag = 'scratch operand']
  %s0 = inlined_call_operand.vmem [shape: f32[16,192], index: 0, kind: input, shape index: {}]
  %s1 = inlined_call_operand.vmem [shape: bf16[192,128], index: 1, kind: input, shape index: {}]
  %s2 = inlined_call_operand.vmem [shape: f32[1,128], index: 2, kind: input, shape index: {}, may-alias: {2,5,8}]
  %s3 = inlined_call_operand.vmem [shape: f32[1,128], index: 3, kind: input, shape index: {}, may-alias: {3,6,9}]
  %s4 = inlined_call_operand.vmem [shape: bf16[384,128], index: 4, kind: input, shape index: {}]
  %s5 = inlined_call_operand.vmem [shape: f32[1,128], index: 5, kind: input, shape index: {}, may-alias: {2,5,8}]
  %s6 = inlined_call_operand.vmem [shape: f32[1,128], index: 6, kind: input, shape index: {}, may-alias: {3,6,9}]
  %s7 = inlined_call_operand.vmem [shape: bf16[64,128], index: 7, kind: input, shape index: {}]
  %s8 = inlined_call_operand.vmem [shape: f32[1,128], index: 8, kind: input, shape index: {}, may-alias: {2,5,8}]
  %s9 = inlined_call_operand.vmem [shape: f32[1,128], index: 9, kind: input, shape index: {}, may-alias: {3,6,9}]
  %s10 = inlined_call_operand.hbm [shape: f32[16,128], index: 10, kind: output, shape index: {}]
  %s11 = sld [smem:[#allocation0]]
  $region50: #{_lambda_.3} parent=0
    _
  %s13 = ssub.s32 1, %s11
  %s14 = scalar_select 0, %s13, %s11
  $region1: #{_lambda_.3} parent=0
    #allocation3 [shape = 'u8[8192]{0}', space=vmem, size = 0x2000, scoped, tag = 'output window, operand 0, single buffered']
    #allocation4 [shape = 's32[1]{0}', space=sflag, size = 0x4, scoped, tag = 'scoped memory for _lambda_.3']
    %15 = vsyncpa [#allocation4], 0
    // Predicated region
    $region2: #{_lambda_.3} parent=1 // pred_check
      _
    $region3: #{_lambda_.3} parent=1 // pred_check_branch
      %17 = sbr.rel (0) target = $region5
    $region4: #{_lambda_.3} parent=1 // pred_region
      _
    $region5: #{_lambda_.3} parent=1 // pred_fallthru
      _
    // Predicated region
    $region6: #{_lambda_.3} parent=1 // pred_check
      _
    $region7: #{_lambda_.3} parent=1 // pred_check_branch
      %19 = sbr.rel (0) target = $region9
    $region8: #{_lambda_.3} parent=1 // pred_region
      _
    $region9: #{_lambda_.3} parent=1 // pred_fallthru
      _
    // Predicated region
    $region10: #{_lambda_.3} parent=1 // pred_check
      _
    $region11: #{_lambda_.3} parent=1 // pred_check_branch
      %21 = sbr.rel (0) target = $region13
    $region12: #{_lambda_.3} parent=1 // pred_region
      _
    $region13: #{_lambda_.3} parent=1 // pred_fallthru
      _
    // Predicated region
    $region14: #{_lambda_.3} parent=1 // pred_check
      _
    $region15: #{_lambda_.3} parent=1 // pred_check_branch
      %23 = sbr.rel (0) target = $region17
    $region16: #{_lambda_.3} parent=1 // pred_region
      _
    $region17: #{_lambda_.3} parent=1 // pred_fallthru
      _
    // Predicated region
    $region18: #{_lambda_.3} parent=1 // pred_check
      _
    $region19: #{_lambda_.3} parent=1 // pred_check_branch
      %25 = sbr.rel (0) target = $region21
    $region20: #{_lambda_.3} parent=1 // pred_region
      _
    $region21: #{_lambda_.3} parent=1 // pred_fallthru
      _
    // Predicated region
    $region22: #{_lambda_.3} parent=1 // pred_check
      _
    $region23: #{_lambda_.3} parent=1 // pred_check_branch
      %27 = sbr.rel (0) target = $region25
    $region24: #{_lambda_.3} parent=1 // pred_region
      _
    $region25: #{_lambda_.3} parent=1 // pred_fallthru
      _
    // Predicated region
    $region26: #{_lambda_.3} parent=1 // pred_check
      _
    $region27: #{_lambda_.3} parent=1 // pred_check_branch
      %29 = sbr.rel (0) target = $region29
    $region28: #{_lambda_.3} parent=1 // pred_region
      _
    $region29: #{_lambda_.3} parent=1 // pred_fallthru
      _
    // Predicated region
    $region30: #{_lambda_.3} parent=1 // pred_check
      _
    $region31: #{_lambda_.3} parent=1 // pred_check_branch
      %31 = sbr.rel (0) target = $region33
    $region32: #{_lambda_.3} parent=1 // pred_region
      _
    $region33: #{_lambda_.3} parent=1 // pred_fallthru
      _
    // Predicated region
    $region34: #{_lambda_.3} parent=1 // pred_check
      _
    $region35: #{_lambda_.3} parent=1 // pred_check_branch
      %33 = sbr.rel (0) target = $region37
    $region36: #{_lambda_.3} parent=1 // pred_region
      _
    $region37: #{_lambda_.3} parent=1 // pred_fallthru
      _
    // Predicated region
    $region38: #{_lambda_.3} parent=1 // pred_check
      _
    $region39: #{_lambda_.3} parent=1 // pred_check_branch
      %35 = sbr.rel (0) target = $region41
    $region40: #{_lambda_.3} parent=1 // pred_region
      _
    $region41: #{_lambda_.3} parent=1 // pred_fallthru
      _
    %v37 = vld [vmem:[%s0] sm:$0xff]
    %v38 = vld [vmem:[%s0 + $0x8] sm:$0xff]
    %v39 = vld [vmem:[%s0 + $0x10] sm:$0xff]
    %v40 = vld [vmem:[%s0 + $0x18] sm:$0xff]
    %v41 = vpack.c.bf16 %v39, %v37
    %v42 = vpack.c.bf16 %v40, %v38
    %v43 = vld [vmem:[%s1] sm:$0xf]
    %v44 = vld [vmem:[%s1 + $0x4] sm:$0xf]
    %v45 = vld [vmem:[%s1 + $0x8] sm:$0xf]
    %v46 = vld [vmem:[%s1 + $0xc] sm:$0xf]
    %v47 = vld [vmem:[%s1 + $0x10] sm:$0xf]
    %v48 = vld [vmem:[%s1 + $0x14] sm:$0xf]
    %v49 = vld [vmem:[%s1 + $0x18] sm:$0xf]
    %v50 = vld [vmem:[%s1 + $0x1c] sm:$0xf]
    %v51 = vld [vmem:[%s1 + $0x20] sm:$0xf]
    %v52 = vld [vmem:[%s1 + $0x24] sm:$0xf]
    %v53 = vld [vmem:[%s1 + $0x28] sm:$0xf]
    %v54 = vld [vmem:[%s1 + $0x2c] sm:$0xf]
    %v55 = vld [vmem:[%s1 + $0x30] sm:$0xf]
    %v56 = vld [vmem:[%s1 + $0x34] sm:$0xf]
    %v57 = vld [vmem:[%s1 + $0x38] sm:$0xf]
    %v58 = vld [vmem:[%s1 + $0x3c] sm:$0xf]
    %v59 = vld [vmem:[%s1 + $0x40] sm:$0xf]
    %v60 = vld [vmem:[%s1 + $0x44] sm:$0xf]
    %v61 = vld [vmem:[%s1 + $0x48] sm:$0xf]
    %v62 = vld [vmem:[%s1 + $0x4c] sm:$0xf]
    %v63 = vld [vmem:[%s1 + $0x50] sm:$0xf]
    %v64 = vld [vmem:[%s1 + $0x54] sm:$0xf]
    %v65 = vld [vmem:[%s1 + $0x58] sm:$0xf]
    %v66 = vld [vmem:[%s1 + $0x5c] sm:$0xf]
    %v91 = vunpack.c.l.b16 %v43
    %v92 = vunpack.c.l.b16 %v44
    %v93 = vunpack.c.l.b16 %v45
    %v94 = vunpack.c.l.b16 %v46
    %v95 = vunpack.c.l.b16 %v47
    %v96 = vunpack.c.l.b16 %v48
    %v97 = vunpack.c.l.b16 %v49
    %v98 = vunpack.c.l.b16 %v50
    %v99 = vunpack.c.l.b16 %v51
    %v100 = vunpack.c.l.b16 %v52
    %v101 = vunpack.c.l.b16 %v53
    %v102 = vunpack.c.l.b16 %v54
    %v103 = vunpack.c.l.b16 %v55
    %v104 = vunpack.c.l.b16 %v56
    %v105 = vunpack.c.l.b16 %v57
    %v106 = vunpack.c.l.b16 %v58
    %v107 = vunpack.c.l.b16 %v59
    %v108 = vunpack.c.l.b16 %v60
    %v109 = vunpack.c.l.b16 %v61
    %v110 = vunpack.c.l.b16 %v62
    %v111 = vunpack.c.l.b16 %v63
    %v112 = vunpack.c.l.b16 %v64
    %v113 = vunpack.c.l.b16 %v65
    %v114 = vunpack.c.l.b16 %v66
    %v115 = vpack.c.b16 %v92, %v91
    %v116 = vpack.c.b16 %v94, %v93
    %v117 = vpack.c.b16 %v96, %v95
    %v118 = vpack.c.b16 %v98, %v97
    %v119 = vpack.c.b16 %v100, %v99
    %v120 = vpack.c.b16 %v102, %v101
    %v121 = vpack.c.b16 %v104, %v103
    %v122 = vpack.c.b16 %v106, %v105
    %v123 = vpack.c.b16 %v108, %v107
    %v124 = vpack.c.b16 %v110, %v109
    %v125 = vpack.c.b16 %v112, %v111
    %v126 = vpack.c.b16 %v114, %v113
    %vm139 = vcmask 523264
    %v141 = vsel %vm139, %v42, 0
    %143 = vmatprep.subr.bf16.mxu0 0
    %144 = vmatpush1.bf16.msra.mxu0 %v122
    %145 = vmatprep.subr.bf16.mxu0 0
    %146 = vmatpush1.bf16.msra.mxu0 %v121
    %147 = vmatprep.subr.bf16.mxu0 0
    %148 = vmatpush1.bf16.msra.mxu0 %v120
    %149 = vmatprep.subr.bf16.mxu0 0
    %150 = vmatpush1.bf16.msra.mxu0 %v119
    %151 = vmatprep.subr.bf16.mxu0 0
    %152 = vmatpush1.bf16.msra.mxu0 %v118
    %153 = vmatprep.subr.bf16.mxu0 0
    %154 = vmatpush1.bf16.msra.mxu0 %v117
    %155 = vmatprep.subr.bf16.mxu0 0
    %156 = vmatpush1.bf16.msra.mxu0 %v116
    %157 = vmatprep.subr.bf16.mxu0 0
    %158 = vmatpush1.bf16.msra.mxu0 %v115
    %159 = vmatprep.subr.bf16.mxu0 0
    %160 = vmatpush2.bf16.msra.mxu0 0
    %161 = vmatprep.subr.bf16.mxu0 0
    %162 = vmatpush2.bf16.msra.mxu0 0
    %163 = vmatprep.subr.bf16.mxu0 0
    %164 = vmatpush2.bf16.msra.mxu0 0
    %165 = vmatprep.subr.bf16.mxu0 0
    %166 = vmatpush2.bf16.msra.mxu0 0
    %167 = vmatprep.subr.bf16.mxu0 0
    %168 = vmatpush2.bf16.msra.mxu0 %v126
    %169 = vmatprep.subr.bf16.mxu0 0
    %170 = vmatpush2.bf16.msra.mxu0 %v125
    %171 = vmatprep.subr.bf16.mxu0 0
    %172 = vmatpush2.bf16.msra.mxu0 %v124
    %173 = vmatprep.subr.bf16.mxu0 0
    %174 = vmatpush2.bf16.msra.mxu0 %v123
    %175 = vmatprep.mubr.bf16.mxu0 %v141
    %176 = vmatmul.mubr.bf16.gmra.mxu0 %v41
    %v177 = vpop.f32.mrf.mxu0
    %v178 = vadd.f32 0.0, %v177
    %v179 = vpop.f32.mrf.mxu0
    %v180 = vpop.f32.mrf.mxu0
    %v181 = vadd.f32 0.0, %v180
    %v182 = vpop.f32.mrf.mxu0
    %183 = vdwg.mxu0
    %184 = vst [vmem:[#allocation2] sm:$0x1] 0.0
    %185 = vst [vmem:[#allocation2 + $0x10] sm:$0x1] 0.0
    %186 = vst [vmem:[#allocation2 + $0x9] sm:$0x1] 0.0
    %187 = vst [vmem:[#allocation2 + $0x19] sm:$0x1] 0.0
    %v188 = vadd.f32 %v178, %v181
    %v189 = vrot.slane %v188, 4
    %v190 = vadd.f32 %v188, %v189
    %v191 = vrot.slane %v190, 2
    %v192 = vadd.f32 %v190, %v191
    %v193 = vrot.slane %v192, 1
    %v194 = vadd.f32 %v192, %v193
    %v195 = vmul.f32 %v178, %v178
    %v196 = vmul.f32 %v181, %v181
    %v197 = vadd.f32 %v195, %v196
    %v198 = vrot.slane %v197, 4
    %v199 = vadd.f32 %v197, %v198
    %v200 = vrot.slane %v199, 2
    %v201 = vadd.f32 %v199, %v200
    %v202 = vrot.slane %v201, 1
    %v203 = vadd.f32 %v201, %v202
    %v204 = vmul.f32 %v194, 0.0625
    %v205 = vmul.f32 %v203, 0.0625
    %v206 = vmul.f32 %v204, %v204
    %v207 = vsub.f32 %v205, %v206
    %v208 = vsub.f32 %v178, %v204
    %v209 = vsub.f32 %v181, %v204
    %v210 = vadd.f32 %v207, 1e-05
    %v211 = vrsqrt.pop %v210
    %v212 = vld [vmem:[%s2] sm:$0x1]
    %v213 = vmul.f32 %v211, %v212
    %v214 = vlaneseq
    %v215 = vshrl.u32 %v214, 7
    %v216 = vsub.s32 0, %v215
    %v217 = vrot.slane %v213, %v216
    %v218 = vmul.f32 %v208, %v217
    %v219 = vmul.f32 %v209, %v217
    %v220 = vld [vmem:[%s3] sm:$0x1]
    %v222 = vlaneseq
    %v223 = vshrl.u32 %v222, 7
    %v224 = vsub.s32 0, %v223
    %v225 = vrot.slane %v220, %v224
    %v227 = vadd.f32 %v218, %v225
    %v228 = vadd.f32 %v219, %v225
    %v229 = vmax.f32 %v227, 0.0
    %v230 = vmax.f32 %v228, 0.0
    %231 = vst [vmem:[#allocation2 + $0x1] sm:$0xff] %v229
    %232 = vst [vmem:[#allocation2 + $0x11] sm:$0xff] %v230
    %v233 = vld [vmem:[#allocation2] sm:$0xff]
    %v234 = vld [vmem:[#allocation2 + $0x10] sm:$0xff]
    %v235 = vld [vmem:[#allocation2 + $0x1] sm:$0xff]
    %v236 = vld [vmem:[#allocation2 + $0x11] sm:$0xff]
    %v237 = vld [vmem:[#allocation2 + $0x2] sm:$0xff]
    %v238 = vld [vmem:[#allocation2 + $0x12] sm:$0xff]
    %v239 = vpack.c.bf16 %v234, %v233
    %v240 = vpack.c.bf16 %v236, %v235
    %v241 = vpack.c.bf16 %v238, %v237
    %v242 = vld [vmem:[%s4] sm:$0xf]
    %v243 = vld [vmem:[%s4 + $0x4] sm:$0xf]
    %v244 = vld [vmem:[%s4 + $0x8] sm:$0xf]
    %v245 = vld [vmem:[%s4 + $0xc] sm:$0xf]
    %v246 = vld [vmem:[%s4 + $0x10] sm:$0xf]
    %v247 = vld [vmem:[%s4 + $0x14] sm:$0xf]
    %v248 = vld [vmem:[%s4 + $0x18] sm:$0xf]
    %v249 = vld [vmem:[%s4 + $0x1c] sm:$0xf]
    %v250 = vld [vmem:[%s4 + $0x20] sm:$0xf]
    %v251 = vld [vmem:[%s4 + $0x24] sm:$0xf]
    %v252 = vld [vmem:[%s4 + $0x28] sm:$0xf]
    %v253 = vld [vmem:[%s4 + $0x2c] sm:$0xf]
    %v254 = vld [vmem:[%s4 + $0x30] sm:$0xf]
    %v255 = vld [vmem:[%s4 + $0x34] sm:$0xf]
    %v256 = vld [vmem:[%s4 + $0x38] sm:$0xf]
    %v257 = vld [vmem:[%s4 + $0x3c] sm:$0xf]
    %v258 = vld [vmem:[%s4 + $0x40] sm:$0xf]
    %v259 = vld [vmem:[%s4 + $0x44] sm:$0xf]
    %v260 = vld [vmem:[%s4 + $0x48] sm:$0xf]
    %v261 = vld [vmem:[%s4 + $0x4c] sm:$0xf]
    %v262 = vld [vmem:[%s4 + $0x50] sm:$0xf]
    %v263 = vld [vmem:[%s4 + $0x54] sm:$0xf]
    %v264 = vld [vmem:[%s4 + $0x58] sm:$0xf]
    %v265 = vld [vmem:[%s4 + $0x5c] sm:$0xf]
    %v266 = vld [vmem:[%s4 + $0x60] sm:$0xf]
    %v267 = vld [vmem:[%s4 + $0x64] sm:$0xf]
    %v268 = vld [vmem:[%s4 + $0x68] sm:$0xf]
    %v269 = vld [vmem:[%s4 + $0x6c] sm:$0xf]
    %v270 = vld [vmem:[%s4 + $0x70] sm:$0xf]
    %v271 = vld [vmem:[%s4 + $0x74] sm:$0xf]
    %v272 = vld [vmem:[%s4 + $0x78] sm:$0xf]
    %v273 = vld [vmem:[%s4 + $0x7c] sm:$0xf]
    %v274 = vld [vmem:[%s4 + $0x80] sm:$0xf]
    %v275 = vld [vmem:[%s4 + $0x84] sm:$0xf]
    %v276 = vld [vmem:[%s4 + $0x88] sm:$0xf]
    %v277 = vld [vmem:[%s4 + $0x8c] sm:$0xf]
    %v278 = vld [vmem:[%s4 + $0x90] sm:$0xf]
    %v279 = vld [vmem:[%s4 + $0x94] sm:$0xf]
    %v280 = vld [vmem:[%s4 + $0x98] sm:$0xf]
    %v281 = vld [vmem:[%s4 + $0x9c] sm:$0xf]
    %v282 = vld [vmem:[%s4 + $0xa0] sm:$0xf]
    %v283 = vld [vmem:[%s4 + $0xa4] sm:$0xf]
    %v284 = vld [vmem:[%s4 + $0xa8] sm:$0xf]
    %v285 = vld [vmem:[%s4 + $0xac] sm:$0xf]
    %v286 = vld [vmem:[%s4 + $0xb0] sm:$0xf]
    %v287 = vld [vmem:[%s4 + $0xb4] sm:$0xf]
    %v288 = vld [vmem:[%s4 + $0xb8] sm:$0xf]
    %v289 = vld [vmem:[%s4 + $0xbc] sm:$0xf]
    %v338 = vunpack.c.l.b16 %v242
    %v339 = vunpack.c.l.b16 %v243
    %v340 = vunpack.c.l.b16 %v244
    %v341 = vunpack.c.l.b16 %v245
    %v342 = vunpack.c.l.b16 %v246
    %v343 = vunpack.c.l.b16 %v247
    %v344 = vunpack.c.l.b16 %v248
    %v345 = vunpack.c.l.b16 %v249
    %v346 = vunpack.c.l.b16 %v250
    %v347 = vunpack.c.l.b16 %v251
    %v348 = vunpack.c.l.b16 %v252
    %v349 = vunpack.c.l.b16 %v253
    %v350 = vunpack.c.l.b16 %v254
    %v351 = vunpack.c.l.b16 %v255
    %v352 = vunpack.c.l.b16 %v256
    %v353 = vunpack.c.l.b16 %v257
    %v354 = vunpack.c.l.b16 %v258
    %v355 = vunpack.c.l.b16 %v259
    %v356 = vunpack.c.l.b16 %v260
    %v357 = vunpack.c.l.b16 %v261
    %v358 = vunpack.c.l.b16 %v262
    %v359 = vunpack.c.l.b16 %v263
    %v360 = vunpack.c.l.b16 %v264
    %v361 = vunpack.c.l.b16 %v265
    %v362 = vunpack.c.l.b16 %v266
    %v363 = vunpack.c.l.b16 %v267
    %v364 = vunpack.c.l.b16 %v268
    %v365 = vunpack.c.l.b16 %v269
    %v366 = vunpack.c.l.b16 %v270
    %v367 = vunpack.c.l.b16 %v271
    %v368 = vunpack.c.l.b16 %v272
    %v369 = vunpack.c.l.b16 %v273
    %v370 = vunpack.c.l.b16 %v274
    %v371 = vunpack.c.l.b16 %v275
    %v372 = vunpack.c.l.b16 %v276
    %v373 = vunpack.c.l.b16 %v277
    %v374 = vunpack.c.l.b16 %v278
    %v375 = vunpack.c.l.b16 %v279
    %v376 = vunpack.c.l.b16 %v280
    %v377 = vunpack.c.l.b16 %v281
    %v378 = vunpack.c.l.b16 %v282
    %v379 = vunpack.c.l.b16 %v283
    %v380 = vunpack.c.l.b16 %v284
    %v381 = vunpack.c.l.b16 %v285
    %v382 = vunpack.c.l.b16 %v286
    %v383 = vunpack.c.l.b16 %v287
    %v384 = vunpack.c.l.b16 %v288
    %v385 = vunpack.c.l.b16 %v289
    %v386 = vpack.c.b16 %v339, %v338
    %v387 = vpack.c.b16 %v341, %v340
    %v388 = vpack.c.b16 %v343, %v342
    %v389 = vpack.c.b16 %v345, %v344
    %v390 = vpack.c.b16 %v347, %v346
    %v391 = vpack.c.b16 %v349, %v348
    %v392 = vpack.c.b16 %v351, %v350
    %v393 = vpack.c.b16 %v353, %v352
    %v394 = vpack.c.b16 %v355, %v354
    %v395 = vpack.c.b16 %v357, %v356
    %v396 = vpack.c.b16 %v359, %v358
    %v397 = vpack.c.b16 %v361, %v360
    %v398 = vpack.c.b16 %v363, %v362
    %v399 = vpack.c.b16 %v365, %v364
    %v400 = vpack.c.b16 %v367, %v366
    %v401 = vpack.c.b16 %v369, %v368
    %v402 = vpack.c.b16 %v371, %v370
    %v403 = vpack.c.b16 %v373, %v372
    %v404 = vpack.c.b16 %v375, %v374
    %v405 = vpack.c.b16 %v377, %v376
    %v406 = vpack.c.b16 %v379, %v378
    %v407 = vpack.c.b16 %v381, %v380
    %v408 = vpack.c.b16 %v383, %v382
    %v409 = vpack.c.b16 %v385, %v384
    %434 = vmatprep.subr.bf16.mxu0 0
    %435 = vmatpush1.bf16.msra.mxu0 %v393
    %436 = vmatprep.subr.bf16.mxu0 0
    %437 = vmatpush1.bf16.msra.mxu0 %v392
    %438 = vmatprep.subr.bf16.mxu0 0
    %439 = vmatpush1.bf16.msra.mxu0 %v391
    %440 = vmatprep.subr.bf16.mxu0 0
    %441 = vmatpush1.bf16.msra.mxu0 %v390
    %442 = vmatprep.subr.bf16.mxu0 0
    %443 = vmatpush1.bf16.msra.mxu0 %v389
    %444 = vmatprep.subr.bf16.mxu0 0
    %445 = vmatpush1.bf16.msra.mxu0 %v388
    %446 = vmatprep.subr.bf16.mxu0 0
    %447 = vmatpush1.bf16.msra.mxu0 %v387
    %448 = vmatprep.subr.bf16.mxu0 0
    %449 = vmatpush1.bf16.msra.mxu0 %v386
    %450 = vmatprep.subr.bf16.mxu0 0
    %451 = vmatpush2.bf16.msra.mxu0 %v401
    %452 = vmatprep.subr.bf16.mxu0 0
    %453 = vmatpush2.bf16.msra.mxu0 %v400
    %454 = vmatprep.subr.bf16.mxu0 0
    %455 = vmatpush2.bf16.msra.mxu0 %v399
    %456 = vmatprep.subr.bf16.mxu0 0
    %457 = vmatpush2.bf16.msra.mxu0 %v398
    %458 = vmatprep.subr.bf16.mxu0 0
    %459 = vmatpush2.bf16.msra.mxu0 %v397
    %460 = vmatprep.subr.bf16.mxu0 0
    %461 = vmatpush2.bf16.msra.mxu0 %v396
    %462 = vmatprep.subr.bf16.mxu0 0
    %463 = vmatpush2.bf16.msra.mxu0 %v395
    %464 = vmatprep.subr.bf16.mxu0 0
    %465 = vmatpush2.bf16.msra.mxu0 %v394
    %466 = vmatprep.mubr.bf16.mxu0 %v240
    %467 = vmatmul.mubr.bf16.gmra.mxu0 %v239
    %v468 = vpop.f32.mrf.mxu0
    %v469 = vadd.f32 0.0, %v468
    %v470 = vpop.f32.mrf.mxu0
    %v471 = vpop.f32.mrf.mxu0
    %v472 = vadd.f32 0.0, %v471
    %v473 = vpop.f32.mrf.mxu0
    %474 = vdwg.mxu0
    %475 = vmatprep.subr.bf16.mxu0 0
    %476 = vmatpush1.bf16.msra.mxu0 %v409
    %477 = vmatprep.subr.bf16.mxu0 0
    %478 = vmatpush1.bf16.msra.mxu0 %v408
    %479 = vmatprep.subr.bf16.mxu0 0
    %480 = vmatpush1.bf16.msra.mxu0 %v407
    %481 = vmatprep.subr.bf16.mxu0 0
    %482 = vmatpush1.bf16.msra.mxu0 %v406
    %483 = vmatprep.subr.bf16.mxu0 0
    %484 = vmatpush1.bf16.msra.mxu0 %v405
    %485 = vmatprep.subr.bf16.mxu0 0
    %486 = vmatpush1.bf16.msra.mxu0 %v404
    %487 = vmatprep.subr.bf16.mxu0 0
    %488 = vmatpush1.bf16.msra.mxu0 %v403
    %489 = vmatprep.subr.bf16.mxu0 0
    %490 = vmatpush1.bf16.msra.mxu0 %v402
    %491 = vmatprep.subr.bf16.mxu0 0
    %492 = vmatpush2.bf16.msra.mxu0 0
    %493 = vmatprep.subr.bf16.mxu0 0
    %494 = vmatpush2.bf16.msra.mxu0 0
    %495 = vmatprep.subr.bf16.mxu0 0
    %496 = vmatpush2.bf16.msra.mxu0 0
    %497 = vmatprep.subr.bf16.mxu0 0
    %498 = vmatpush2.bf16.msra.mxu0 0
    %499 = vmatprep.subr.bf16.mxu0 0
    %500 = vmatpush2.bf16.msra.mxu0 0
    %501 = vmatprep.subr.bf16.mxu0 0
    %502 = vmatpush2.bf16.msra.mxu0 0
    %503 = vmatprep.subr.bf16.mxu0 0
    %504 = vmatpush2.bf16.msra.mxu0 0
    %505 = vmatprep.subr.bf16.mxu0 0
    %506 = vmatpush2.bf16.msra.mxu0 0
    %507 = vmatprep.mubr.bf16.mxu0 0
    %508 = vmatmul.mubr.bf16.gmra.mxu0 %v241
    %v509 = vpop.f32.mrf.mxu0
    %v510 = vadd.f32 %v469, %v509
    %v511 = vpop.f32.mrf.mxu0
    %v512 = vpop.f32.mrf.mxu0
    %v513 = vadd.f32 %v472, %v512
    %v514 = vpop.f32.mrf.mxu0
    %515 = vdwg.mxu0
    %v516 = vadd.f32 %v510, %v513
    %v517 = vrot.slane %v516, 4
    %v518 = vadd.f32 %v516, %v517
    %v519 = vrot.slane %v518, 2
    %v520 = vadd.f32 %v518, %v519
    %v521 = vrot.slane %v520, 1
    %v522 = vadd.f32 %v520, %v521
    %v523 = vmul.f32 %v510, %v510
    %v524 = vmul.f32 %v513, %v513
    %v525 = vadd.f32 %v523, %v524
    %v526 = vrot.slane %v525, 4
    %v527 = vadd.f32 %v525, %v526
    %v528 = vrot.slane %v527, 2
    %v529 = vadd.f32 %v527, %v528
    %v530 = vrot.slane %v529, 1
    %v531 = vadd.f32 %v529, %v530
    %v532 = vmul.f32 %v522, 0.0625
    %v533 = vmul.f32 %v531, 0.0625
    %v534 = vmul.f32 %v532, %v532
    %v535 = vsub.f32 %v533, %v534
    %v536 = vsub.f32 %v510, %v532
    %v537 = vsub.f32 %v513, %v532
    %v538 = vadd.f32 %v535, 1e-05
    %v539 = vrsqrt.pop %v538
    %v540 = vld [vmem:[%s5] sm:$0x1]
    %v541 = vmul.f32 %v539, %v540
    %v542 = vlaneseq
    %v543 = vshrl.u32 %v542, 7
    %v544 = vsub.s32 0, %v543
    %v545 = vrot.slane %v541, %v544
    %v546 = vmul.f32 %v536, %v545
    %v547 = vmul.f32 %v537, %v545
    %v548 = vld [vmem:[%s6] sm:$0x1]
    %v550 = vlaneseq
    %v551 = vshrl.u32 %v550, 7
    %v552 = vsub.s32 0, %v551
    %v553 = vrot.slane %v548, %v552
    %v555 = vadd.f32 %v546, %v553
    %v556 = vadd.f32 %v547, %v553
    %v557 = vld [vmem:[%s0] sm:$0xff]
    %v558 = vld [vmem:[%s0 + $0x10] sm:$0xff]
    %v559 = vpack.c.bf16 %v558, %v557
    %v560 = vld [vmem:[%s7] sm:$0xf]
    %v561 = vld [vmem:[%s7 + $0x4] sm:$0xf]
    %v562 = vld [vmem:[%s7 + $0x8] sm:$0xf]
    %v563 = vld [vmem:[%s7 + $0xc] sm:$0xf]
    %v564 = vld [vmem:[%s7 + $0x10] sm:$0xf]
    %v565 = vld [vmem:[%s7 + $0x14] sm:$0xf]
    %v566 = vld [vmem:[%s7 + $0x18] sm:$0xf]
    %v567 = vld [vmem:[%s7 + $0x1c] sm:$0xf]
    %569 = vrot.lane.b32.xlu0 %v559, 64
    %v570 = vpop.permute.xlu0 %569
    %v579 = vunpack.c.l.b16 %v560
    %v580 = vunpack.c.l.b16 %v561
    %v581 = vunpack.c.l.b16 %v562
    %v582 = vunpack.c.l.b16 %v563
    %v583 = vunpack.c.l.b16 %v564
    %v584 = vunpack.c.l.b16 %v565
    %v585 = vunpack.c.l.b16 %v566
    %v586 = vunpack.c.l.b16 %v567
    %v587 = vpack.c.b16 %v580, %v579
    %v588 = vpack.c.b16 %v582, %v581
    %v589 = vpack.c.b16 %v584, %v583
    %v590 = vpack.c.b16 %v586, %v585
    %v596 = vsel %vm139, %v570, 0
    %598 = vmatprep.subr.bf16.mxu0 0
    %599 = vmatpush1.bf16.msra.mxu0 0
    %600 = vmatprep.subr.bf16.mxu0 0
    %601 = vmatpush1.bf16.msra.mxu0 0
    %602 = vmatprep.subr.bf16.mxu0 0
    %603 = vmatpush1.bf16.msra.mxu0 0
    %604 = vmatprep.subr.bf16.mxu0 0
    %605 = vmatpush1.bf16.msra.mxu0 0
    %606 = vmatprep.subr.bf16.mxu0 0
    %607 = vmatpush1.bf16.msra.mxu0 %v590
    %608 = vmatprep.subr.bf16.mxu0 0
    %609 = vmatpush1.bf16.msra.mxu0 %v589
    %610 = vmatprep.subr.bf16.mxu0 0
    %611 = vmatpush1.bf16.msra.mxu0 %v588
    %612 = vmatprep.subr.bf16.mxu0 0
    %613 = vmatpush1.bf16.msra.mxu0 %v587
    %614 = vmatprep.subr.bf16.mxu0 0
    %615 = vmatpush2.bf16.msra.mxu0 0
    %616 = vmatprep.subr.bf16.mxu0 0
    %617 = vmatpush2.bf16.msra.mxu0 0
    %618 = vmatprep.subr.bf16.mxu0 0
    %619 = vmatpush2.bf16.msra.mxu0 0
    %620 = vmatprep.subr.bf16.mxu0 0
    %621 = vmatpush2.bf16.msra.mxu0 0
    %622 = vmatprep.subr.bf16.mxu0 0
    %623 = vmatpush2.bf16.msra.mxu0 0
    %624 = vmatprep.subr.bf16.mxu0 0
    %625 = vmatpush2.bf16.msra.mxu0 0
    %626 = vmatprep.subr.bf16.mxu0 0
    %627 = vmatpush2.bf16.msra.mxu0 0
    %628 = vmatprep.subr.bf16.mxu0 0
    %629 = vmatpush2.bf16.msra.mxu0 0
    %630 = vmatprep.mubr.bf16.mxu0 0
    %631 = vmatmul.mubr.bf16.gmra.mxu0 %v596
    %v632 = vpop.f32.mrf.mxu0
    %v633 = vadd.f32 0.0, %v632
    %v634 = vpop.f32.mrf.mxu0
    %v635 = vpop.f32.mrf.mxu0
    %v636 = vadd.f32 0.0, %v635
    %v637 = vpop.f32.mrf.mxu0
    %638 = vdwg.mxu0
    %v639 = vadd.f32 %v633, %v636
    %v640 = vrot.slane %v639, 4
    %v641 = vadd.f32 %v639, %v640
    %v642 = vrot.slane %v641, 2
    %v643 = vadd.f32 %v641, %v642
    %v644 = vrot.slane %v643, 1
    %v645 = vadd.f32 %v643, %v644
    %v646 = vmul.f32 %v633, %v633
    %v647 = vmul.f32 %v636, %v636
    %v648 = vadd.f32 %v646, %v647
    %v649 = vrot.slane %v648, 4
    %v650 = vadd.f32 %v648, %v649
    %v651 = vrot.slane %v650, 2
    %v652 = vadd.f32 %v650, %v651
    %v653 = vrot.slane %v652, 1
    %v654 = vadd.f32 %v652, %v653
    %v655 = vmul.f32 %v645, 0.0625
    %v656 = vmul.f32 %v654, 0.0625
    %v657 = vmul.f32 %v655, %v655
    %v658 = vsub.f32 %v656, %v657
    %v659 = vsub.f32 %v633, %v655
    %v660 = vsub.f32 %v636, %v655
    %v661 = vadd.f32 %v658, 1e-05
    %v662 = vrsqrt.pop %v661
    %v663 = vld [vmem:[%s8] sm:$0x1]
    %v664 = vmul.f32 %v662, %v663
    %v665 = vlaneseq
    %v666 = vshrl.u32 %v665, 7
    %v667 = vsub.s32 0, %v666
    %v668 = vrot.slane %v664, %v667
    %v669 = vmul.f32 %v659, %v668
    %v670 = vmul.f32 %v660, %v668
    %v671 = vld [vmem:[%s9] sm:$0x1]
    %v673 = vlaneseq
    %v674 = vshrl.u32 %v673, 7
    %v675 = vsub.s32 0, %v674
    %v676 = vrot.slane %v671, %v675
    %v678 = vadd.f32 %v669, %v676
    %v679 = vadd.f32 %v670, %v676
    %v680 = vadd.f32 %v555, %v678
    %v681 = vadd.f32 %v556, %v679
    %v682 = vmax.f32 %v680, 0.0
    %v683 = vmax.f32 %v681, 0.0
    %684 = vst [vmem:[#allocation3] sm:$0xff] %v682
    %685 = vst [vmem:[#allocation3 + $0x8] sm:$0xff] %v683
    // Predicated region
    $region42: #{_lambda_.3} parent=1 // pred_check
      _
    $region43: #{_lambda_.3} parent=1 // pred_check_branch
      %687 = sbr.rel (0) target = $region45
    $region44: #{_lambda_.3} parent=1 // pred_region
      %s689 = ssub.s32 256, 256
      %690 = vsyncadd [#allocation4], %s689
      %s691 = sshll.u32 [#allocation3], 4
      %s692 = int_to_ptr.vmem [resolvable:$true] %s691
      %697 = dma.vmem_to_hbm [thread:$0]  %s692, 256, %s10, [#allocation4], 128, 128, 8
    $region45: #{_lambda_.3} parent=1 // pred_fallthru
      _
    // Predicated region
    $region46: #{_lambda_.3} parent=1 // pred_check
      _
    $region47: #{_lambda_.3} parent=1 // pred_check_branch
      %699 = sbr.rel (0) target = $region49
    $region48: #{_lambda_.3} parent=1 // pred_region
      %700 = dma.done [#allocation4], 256
    $region49: #{_lambda_.3} parent=1 // pred_fallthru
      _
    %701 = vsyncpa [#allocation4], 1

</llo_original>
